<compile_context>
chip_gen: v6e
topology: v6e:2x2x1
jax: 0.10.0
libtpu: 0.0.40
codegen_flags: <defaults>
</compile_context>

<pallas_src>
import collections
import functools

import jax
import jax.numpy as jnp
from jax import lax
from jax.experimental import pallas as pl
from jax.experimental.pallas import tpu as pltpu

GN_EPS = 1e-5

Meta = collections.namedtuple(
    "Meta", ["num_blocks", "groups", "B", "H", "W", "C", "Cout", "G", "num_groups"])


# --------------------------------------------------------------------------- fused kernel
def _denoising_block_kernel(x_ref, masks_ref, ab_ref, cvec_ref, wflat_ref,
                            resw_ref, resb_ref, out_ref, skip_ref,
                            *, num_blocks, groups, W, HW, G):
    C = x_ref.shape[1]
    N = x_ref.shape[2]            # = G * HW  (G images folded into the lane axis)
    cg = C // groups

    # Pre-broadcast boundary masks, loaded once per grid step (center tap needs none).
    masks = {t: masks_ref[t] for t in range(9) if t != 4}     # each (C, N), f32

    def conv3x3(h, wflat, bias=None):
        # h: (Cin, N), wflat: (Cout, 9*Cin).  Build the (9*Cin, N) im2col matrix with lane
        # rotations + boundary masks (masks implement zero padding AND the row/image-seam
        # wrap), then one lane-dense MXU matmul.
        cols = []
        for t in range(9):
            dy, dx = divmod(t, 3)
            s = (dy - 1) * W + (dx - 1)                        # flat offset of the tap source
            shifted = h if s == 0 else pltpu.roll(h, (-s) % N, 1)
            cols.append(shifted if t == 4 else shifted * masks[t])
        patches = jnp.concatenate(cols, axis=0)                # (9*Cin, N)
        y = jnp.dot(wflat, patches, preferred_element_type=jnp.float32)
        return y if bias is None else y + bias

    def gn_stats(y):
        # Per-image GroupNorm statistics; y: (C, HW).  Lane reductions; with groups == C
        # (cg == 1, this config) the per-channel sums are already the per-group stats.
        s1 = jnp.sum(y, axis=1, keepdims=True)                 # (C, 1)
        s2 = jnp.sum(y * y, axis=1, keepdims=True)
        if cg == 1:
            n = float(HW)
            mean = s1 / n
            var = s2 / n - mean * mean
        else:  # general case: aggregate the tiny (C,1) partials per group
            n = float(HW * cg)
            sg1 = jnp.sum(s1.reshape(groups, cg), axis=1, keepdims=True)
            sg2 = jnp.sum(s2.reshape(groups, cg), axis=1, keepdims=True)
            mg = sg1 / n
            vg = sg2 / n - mg * mg
            mean = jnp.broadcast_to(mg[:, None, :], (groups, cg, 1)).reshape(C, 1)
            var = jnp.broadcast_to(vg[:, None, :], (groups, cg, 1)).reshape(C, 1)
        return mean, lax.rsqrt(var + GN_EPS)

    def norm_affine(y, a_list, c_list):
        # GroupNorm (per image!) with the affine (and time scale/shift) folded into the
        # rsqrt factor: post-norm path is a single FMA per element.
        # In folded mode the per-image slices are static, vreg-aligned lane windows.
        pieces = []
        for i in range(G):
            yi = y if G == 1 else y[:, i * HW:(i + 1) * HW]
            mean, rstd = gn_stats(yi)
            inv = rstd * a_list[i]                              # (C, 1)
            off = c_list[i] - mean * inv
            pieces.append(yi * inv + off)
        return pieces[0] if G == 1 else jnp.concatenate(pieces, axis=1)

    h = x_ref[0]                                                # (C, N) f32

    for blk in range(num_blocks):                               # static unroll (num_blocks=2)
        w1 = wflat_ref[blk, 0]                                  # (C, 9C)
        w2 = wflat_ref[blk, 1]
        g2 = cvec_ref[blk, 2]                                   # (C, 1)
        be2 = cvec_ref[blk, 3]
        # With one channel per group, GN mean subtraction cancels a per-channel conv bias
        # exactly -> skip the dead bias add; keep it in the general case.
        b1 = None if cg == 1 else cvec_ref[blk, 0]
        b2 = None if cg == 1 else cvec_ref[blk, 1]
        a_cg = ab_ref[2 * blk, 0]                               # (C, G)  = g1*(scale+1)
        c_cg = ab_ref[2 * blk + 1, 0]                           # (C, G)  = be1*(scale+1)+shift
        a1_list = [a_cg[:, i:i + 1] for i in range(G)]
        c1_list = [c_cg[:, i:i + 1] for i in range(G)]

        res = h
        # ConvBlock 1: conv -> GroupNorm -> (affine & time scale/shift, folded) -> SiLU
        y = conv3x3(h, w1, b1)
        y = norm_affine(y, a1_list, c1_list)
        y = y * jax.nn.sigmoid(y)
        # ConvBlock 2: conv -> GroupNorm -> affine -> SiLU
        y = conv3x3(y, w2, b2)
        y = norm_affine(y, [g2] * G, [be2] * G)
        y = y * jax.nn.sigmoid(y)
        # residual: nn.Identity (in_channels == out_channels inside DenoisingBlock)
        h = res + y

    # attention_block = nn.Identity()  (use_attention=False)
    skip_ref[0] = h.astype(skip_ref.dtype)
    # resolution_block: Conv2d(C -> Cout, 3x3, pad=1)  (ResolutionMode.NONE)
    out_ref[0] = conv3x3(h, resw_ref[...], resb_ref[...]).astype(out_ref.dtype)


# --------------------------------------------------------------------------- host helpers
def _flatten_conv_w(w):
    # (Cout, Cin, 3, 3) PyTorch layout -> (Cout, 9*Cin), row order (ky*3+kx)*Cin + ci.
    cout, cin = w.shape[0], w.shape[1]
    return jnp.transpose(w, (0, 2, 3, 1)).reshape(cout, 9 * cin)


def _build_tap_masks(H, W):
    # mask[t, 0, p] = 1 iff output pixel p has a valid (non-padding) source for tap t.
    idx = jnp.arange(H * W, dtype=jnp.int32)
    r, c = idx // W, idx % W
    masks = []
    for dy in range(3):
        for dx in range(3):
            ok = ((r + dy - 1 >= 0) & (r + dy - 1 < H) &
                  (c + dx - 1 >= 0) & (c + dx - 1 < W))
            masks.append(ok.astype(jnp.float32))
    return jnp.stack(masks, axis=0)[:, None, :]                 # (9, 1, H*W)


def _auto_fold_batch(B):
    # v7x has 2 TensorCores per chip -> keep one image per core (grid=(B,)).
    # Single-TC v5e/v6e -> fold the batch into the lane axis (grid collapses to 1 step).
    if B == 1:
        return True
    try:
        kind = jax.devices()[0].device_kind.lower()
    except Exception:
        return True
    return "v7" not in kind


def _time_scale_shift(t_emb, time_w, time_b):
    # F.silu in ResnetBlock.forward AND nn.SiLU() inside the Sequential (as written).
    h = jax.nn.silu(jax.nn.silu(t_emb))                         # (B, T)
    return jnp.einsum("bt,ntc->nbc", h, time_w,
                      precision=lax.Precision.HIGHEST) + time_b[:, None, :]   # (nb, B, 2C)


# --------------------------------------------------------------------------- prepare (once)
def prepare_denoising_block(params, *, B, H, W, groups=8, fold_batch=None):
    """One-time packing of all x-/time-independent constants (hoisted out of the forward)."""
    blocks = params["blocks"]
    nb = len(blocks)
    C = blocks[0]["w1"].shape[0]
    Cout = params["res_w"].shape[0]
    if fold_batch is None:
        fold_batch = _auto_fold_batch(B)
    G = B if fold_batch else 1
    num_groups = 1 if fold_batch else B

    wflat = jnp.stack([jnp.stack([_flatten_conv_w(bp["w1"]), _flatten_conv_w(bp["w2"])])
                       for bp in blocks])                                      # (nb, 2, C, 9C)
    cvec = jnp.stack([jnp.stack([bp["b1"], bp["b2"], bp["g2"], bp["be2"]])
                      for bp in blocks])[..., None]                            # (nb, 4, C, 1)
    masks = jnp.broadcast_to(_build_tap_masks(H, W), (9, C, H * W))            # pre-broadcast
    if fold_batch:
        masks = jnp.tile(masks, (1, 1, B))                                     # (9, C, B*HW)

    consts = dict(
        wflat=wflat,
        cvec=cvec,
        masks=jnp.asarray(masks),
        res_w=_flatten_conv_w(params["res_w"]),                                # (Cout, 9C)
        res_b=params["res_b"][:, None],                                        # (Cout, 1)
        time_w=jnp.stack([bp["time_w"] for bp in blocks]),                     # (nb, T, 2C)
        time_b=jnp.stack([bp["time_b"] for bp in blocks]),                     # (nb, 2C)
        g1=jnp.stack([bp["g1"] for bp in blocks]),                             # (nb, C)
        be1=jnp.stack([bp["be1"] for bp in blocks]),                           # (nb, C)
    )
    meta = Meta(num_blocks=nb, groups=groups, B=B, H=H, W=W, C=C, Cout=Cout,
                G=G, num_groups=num_groups)
    return consts, meta


# --------------------------------------------------------------------------- forward
@functools.partial(jax.jit, static_argnames=("meta",))
def denoising_block(x, t_emb, consts, meta):
    """x: (B, C, H, W) NCHW; t_emb: (B, T).  Returns (resolution_out, skip)."""
    B, C, H, W = meta.B, meta.C, meta.H, meta.W
    nb, G, ng, Cout = meta.num_blocks, meta.G, meta.num_groups, meta.Cout
    HW = H * W
    N = G * HW

    # --- per-call prep: ONLY the time-dependent pieces (tiny, fused XLA ops) ---
    ss = _time_scale_shift(t_emb, consts["time_w"], consts["time_b"])          # (nb, B, 2C)
    scale, shift = ss[..., :C], ss[..., C:]     # TODO(synk): chunk order assumed (scale first)
    a1 = consts["g1"][:, None, :] * (scale + 1.0)                              # (nb, B, C)
    c1 = consts["be1"][:, None, :] * (scale + 1.0) + shift
    ab = jnp.stack([a1, c1], axis=1)                                           # (nb, 2, B, C)
    if G == 1:
        ab = ab[..., None]                                                     # (nb,2,B,C,1)
        x_in = x.reshape(B, C, HW)
    else:
        ab = jnp.transpose(ab, (0, 1, 3, 2))[:, :, None, :, :]                 # (nb,2,1,C,B)
        x_in = jnp.transpose(x, (1, 0, 2, 3)).reshape(1, C, N)
    ab = ab.reshape(2 * nb, ng, C, G)

    kernel = functools.partial(_denoising_block_kernel, num_blocks=nb,
                               groups=meta.groups, W=W, HW=HW, G=G)

    out_flat, skip_flat = pl.pallas_call(
        kernel,
        out_shape=(jax.ShapeDtypeStruct((ng, Cout, N), x.dtype),
                   jax.ShapeDtypeStruct((ng, C, N), x.dtype)),
        grid=(ng,),
        in_specs=[
            pl.BlockSpec((1, C, N), lambda g: (g, 0, 0)),                      # x
            pl.BlockSpec((9, C, N), lambda g: (0, 0, 0)),                      # tap masks
            pl.BlockSpec((2 * nb, 1, C, G), lambda g: (0, g, 0, 0)),           # folded a/c
            pl.BlockSpec((nb, 4, C, 1), lambda g: (0, 0, 0, 0)),               # b1,b2,g2,be2
            pl.BlockSpec((nb, 2, C, 9 * C), lambda g: (0, 0, 0, 0)),           # conv weights
            pl.BlockSpec((Cout, 9 * C), lambda g: (0, 0)),                     # resolution W
            pl.BlockSpec((Cout, 1), lambda g: (0, 0)),                         # resolution b
        ],
        out_specs=(
            pl.BlockSpec((1, Cout, N), lambda g: (g, 0, 0)),
            pl.BlockSpec((1, C, N), lambda g: (g, 0, 0)),
        ),
        compiler_params=pltpu.CompilerParams(dimension_semantics=("parallel",)),
    )(x_in, consts["masks"], ab, consts["cvec"], consts["wflat"],
      consts["res_w"], consts["res_b"])

    if G == 1:
        return out_flat.reshape(B, Cout, H, W), skip_flat.reshape(B, C, H, W)
    out = jnp.transpose(out_flat.reshape(Cout, B, H, W), (1, 0, 2, 3))
    skip = jnp.transpose(skip_flat.reshape(C, B, H, W), (1, 0, 2, 3))
    return out, skip


# --------------------------------------------------------------------------- reference
def _reference_forward(x, t_emb, params, groups=8):
    """Pure-JAX (non-Pallas) reference used only for the numeric self-check."""
    def conv3x3(h, w, b):
        y = lax.conv_general_dilated(h, w, (1, 1), ((1, 1), (1, 1)),
                                     dimension_numbers=("NCHW", "OIHW", "NCHW"),
                                     precision=lax.Precision.HIGHEST)
        return y + b[None, :, None, None]

    def group_norm(h, gamma, beta):
        B, C, H, W = h.shape
        g = h.reshape(B, groups, (C // groups) * H * W)
        mean = g.mean(axis=2, keepdims=True)
        var = g.var(axis=2, keepdims=True)
        g = (g - mean) / jnp.sqrt(var + GN_EPS)
        return g.reshape(B, C, H, W) * gamma[None, :, None, None] + beta[None, :, None, None]

    silu = lambda v: v * jax.nn.sigmoid(v)
    C = x.shape[1]
    h = x
    for bp in params["blocks"]:
        t_act = jax.nn.silu(jax.nn.silu(t_emb))
        ss = jnp.dot(t_act, bp["time_w"], precision=lax.Precision.HIGHEST) + bp["time_b"]
        scale, shift = ss[:, :C, None, None], ss[:, C:, None, None]
        res = h
        y = silu(group_norm(conv3x3(h, bp["w1"], bp["b1"]), bp["g1"], bp["be1"])
                 * (scale + 1.0) + shift)
        y = silu(group_norm(conv3x3(y, bp["w2"], bp["b2"]), bp["g2"], bp["be2"]))
        h = res + y
    return conv3x3(h, params["res_w"], params["res_b"]), h


# --------------------------------------------------------------------------- setup / run
def init_params(key, C, Cout, T, num_blocks):
    ks = iter(jax.random.split(key, 10 * num_blocks + 2))
    blocks = []
    for _ in range(num_blocks):
        blocks.append(dict(
            w1=0.1 * jax.random.normal(next(ks), (C, C, 3, 3), jnp.float32),
            b1=0.1 * jax.random.normal(next(ks), (C,), jnp.float32),
            g1=1.0 + 0.1 * jax.random.normal(next(ks), (C,), jnp.float32),
            be1=0.1 * jax.random.normal(next(ks), (C,), jnp.float32),
            w2=0.1 * jax.random.normal(next(ks), (C, C, 3, 3), jnp.float32),
            b2=0.1 * jax.random.normal(next(ks), (C,), jnp.float32),
            g2=1.0 + 0.1 * jax.random.normal(next(ks), (C,), jnp.float32),
            be2=0.1 * jax.random.normal(next(ks), (C,), jnp.float32),
            time_w=0.1 * jax.random.normal(next(ks), (T, 2 * C), jnp.float32),
            time_b=0.1 * jax.random.normal(next(ks), (2 * C,), jnp.float32),
        ))
    return dict(
        blocks=blocks,
        res_w=0.1 * jax.random.normal(next(ks), (Cout, C, 3, 3), jnp.float32),
        res_b=0.1 * jax.random.normal(next(ks), (Cout,), jnp.float32),
    )


if __name__ == "__main__":
    B, C, H, W = 2, 8, 16, 16            # NCHW, matching the PyTorch module
    T, Cout, num_blocks, groups = 32, 16, 2, 8

    key = jax.random.PRNGKey(0)
    kx, kt, kp = jax.random.split(key, 3)
    x = jax.random.normal(kx, (B, C, H, W), jnp.float32)
    t_emb = jax.random.normal(kt, (B, T), jnp.float32)
    params = init_params(kp, C, Cout, T, num_blocks)

    ref_out, ref_skip = _reference_forward(x, t_emb, params, groups=groups)

    # Validate BOTH grid strategies (batch-folded for single-TC v5e/v6e, per-image grid for
    # 2-TC v7x); the auto mode (_auto_fold_batch) selects one of these at prepare time.
    for fold in (True, False):
        consts, meta = prepare_denoising_block(params, B=B, H=H, W=W,
                                               groups=groups, fold_batch=fold)
        out, skip = denoising_block(x, t_emb, consts, meta)
        jax.block_until_ready((out, skip))
        assert out.shape == (B, Cout, H, W) and skip.shape == (B, C, H, W)
        err = max(float(jnp.max(jnp.abs(out - ref_out))),
                  float(jnp.max(jnp.abs(skip - ref_skip))))
        assert err < 2e-2, f"fold_batch={fold}: max abs error vs reference: {err}"

    print("KERNEL_OK")
</pallas_src>

<mosaic_0001>
module attributes {stable_mosaic.version = 11 : i64} {
  func.func @_denoising_block_kernel(%arg0: i32, %arg1: memref<1x8x512xf32, #tpu.memory_space<vmem>>, %arg2: memref<9x8x512xf32, #tpu.memory_space<vmem>>, %arg3: memref<4x1x8x2xf32, #tpu.memory_space<vmem>>, %arg4: memref<2x4x8x1xf32, #tpu.memory_space<vmem>>, %arg5: memref<2x2x8x72xf32, #tpu.memory_space<vmem>>, %arg6: memref<16x72xf32, #tpu.memory_space<vmem>>, %arg7: memref<16x1xf32, #tpu.memory_space<vmem>>, %arg8: memref<1x16x512xf32, #tpu.memory_space<vmem>>, %arg9: memref<1x8x512xf32, #tpu.memory_space<vmem>>) attributes {dimension_semantics = [#tpu.dimension_semantics<parallel>], iteration_bounds = array<i64: 1>, scalar_prefetch = 0 : i64, scratch_operands = 0 : i64, tpu.core_type = #tpu.core_type<tc>, window_params = [{transform_indices = @transform_0, window_bounds = array<i64: 1, 8, 512>}, {pipeline_mode = #tpu.pipeline_mode<synchronous>, transform_indices = @transform_1, window_bounds = array<i64: 9, 8, 512>}, {transform_indices = @transform_2, window_bounds = array<i64: 4, 1, 8, 2>}, {pipeline_mode = #tpu.pipeline_mode<synchronous>, transform_indices = @transform_3, window_bounds = array<i64: 2, 4, 8, 1>}, {pipeline_mode = #tpu.pipeline_mode<synchronous>, transform_indices = @transform_4, window_bounds = array<i64: 2, 2, 8, 72>}, {pipeline_mode = #tpu.pipeline_mode<synchronous>, transform_indices = @transform_5, window_bounds = array<i64: 16, 72>}, {pipeline_mode = #tpu.pipeline_mode<synchronous>, transform_indices = @transform_6, window_bounds = array<i64: 16, 1>}, {transform_indices = @transform_7, window_bounds = array<i64: 1, 16, 512>}, {transform_indices = @transform_8, window_bounds = array<i64: 1, 8, 512>}]} {
    %c0 = arith.constant 0 : index
    %c0_0 = arith.constant 0 : index
    %c0_1 = arith.constant 0 : index
    %0 = vector.load %arg2[%c0, %c0_0, %c0_1] : memref<9x8x512xf32, #tpu.memory_space<vmem>>, vector<1x8x512xf32>
    %1 = vector.shape_cast %0 : vector<1x8x512xf32> to vector<8x512xf32>
    %c1 = arith.constant 1 : index
    %c0_2 = arith.constant 0 : index
    %c0_3 = arith.constant 0 : index
    %2 = vector.load %arg2[%c1, %c0_2, %c0_3] : memref<9x8x512xf32, #tpu.memory_space<vmem>>, vector<1x8x512xf32>
    %3 = vector.shape_cast %2 : vector<1x8x512xf32> to vector<8x512xf32>
    %c2 = arith.constant 2 : index
    %c0_4 = arith.constant 0 : index
    %c0_5 = arith.constant 0 : index
    %4 = vector.load %arg2[%c2, %c0_4, %c0_5] : memref<9x8x512xf32, #tpu.memory_space<vmem>>, vector<1x8x512xf32>
    %5 = vector.shape_cast %4 : vector<1x8x512xf32> to vector<8x512xf32>
    %c3 = arith.constant 3 : index
    %c0_6 = arith.constant 0 : index
    %c0_7 = arith.constant 0 : index
    %6 = vector.load %arg2[%c3, %c0_6, %c0_7] : memref<9x8x512xf32, #tpu.memory_space<vmem>>, vector<1x8x512xf32>
    %7 = vector.shape_cast %6 : vector<1x8x512xf32> to vector<8x512xf32>
    %c5 = arith.constant 5 : index
    %c0_8 = arith.constant 0 : index
    %c0_9 = arith.constant 0 : index
    %8 = vector.load %arg2[%c5, %c0_8, %c0_9] : memref<9x8x512xf32, #tpu.memory_space<vmem>>, vector<1x8x512xf32>
    %9 = vector.shape_cast %8 : vector<1x8x512xf32> to vector<8x512xf32>
    %c6 = arith.constant 6 : index
    %c0_10 = arith.constant 0 : index
    %c0_11 = arith.constant 0 : index
    %10 = vector.load %arg2[%c6, %c0_10, %c0_11] : memref<9x8x512xf32, #tpu.memory_space<vmem>>, vector<1x8x512xf32>
    %11 = vector.shape_cast %10 : vector<1x8x512xf32> to vector<8x512xf32>
    %c7 = arith.constant 7 : index
    %c0_12 = arith.constant 0 : index
    %c0_13 = arith.constant 0 : index
    %12 = vector.load %arg2[%c7, %c0_12, %c0_13] : memref<9x8x512xf32, #tpu.memory_space<vmem>>, vector<1x8x512xf32>
    %13 = vector.shape_cast %12 : vector<1x8x512xf32> to vector<8x512xf32>
    %c8 = arith.constant 8 : index
    %c0_14 = arith.constant 0 : index
    %c0_15 = arith.constant 0 : index
    %14 = vector.load %arg2[%c8, %c0_14, %c0_15] : memref<9x8x512xf32, #tpu.memory_space<vmem>>, vector<1x8x512xf32>
    %15 = vector.shape_cast %14 : vector<1x8x512xf32> to vector<8x512xf32>
    %c0_16 = arith.constant 0 : index
    %c0_17 = arith.constant 0 : index
    %c0_18 = arith.constant 0 : index
    %16 = vector.load %arg1[%c0_16, %c0_17, %c0_18] : memref<1x8x512xf32, #tpu.memory_space<vmem>>, vector<1x8x512xf32>
    %17 = vector.shape_cast %16 : vector<1x8x512xf32> to vector<8x512xf32>
    %c0_19 = arith.constant 0 : index
    %c0_20 = arith.constant 0 : index
    %c0_21 = arith.constant 0 : index
    %c0_22 = arith.constant 0 : index
    %18 = vector.load %arg5[%c0_19, %c0_20, %c0_21, %c0_22] : memref<2x2x8x72xf32, #tpu.memory_space<vmem>>, vector<1x1x8x72xf32>
    %19 = vector.shape_cast %18 : vector<1x1x8x72xf32> to vector<8x72xf32>
    %c0_23 = arith.constant 0 : index
    %c1_24 = arith.constant 1 : index
    %c0_25 = arith.constant 0 : index
    %c0_26 = arith.constant 0 : index
    %20 = vector.load %arg5[%c0_23, %c1_24, %c0_25, %c0_26] : memref<2x2x8x72xf32, #tpu.memory_space<vmem>>, vector<1x1x8x72xf32>
    %21 = vector.shape_cast %20 : vector<1x1x8x72xf32> to vector<8x72xf32>
    %c0_27 = arith.constant 0 : index
    %c2_28 = arith.constant 2 : index
    %c0_29 = arith.constant 0 : index
    %c0_30 = arith.constant 0 : index
    %22 = vector.load %arg4[%c0_27, %c2_28, %c0_29, %c0_30] : memref<2x4x8x1xf32, #tpu.memory_space<vmem>>, vector<1x1x8x1xf32>
    %23 = vector.shape_cast %22 : vector<1x1x8x1xf32> to vector<8x1xf32>
    %c0_31 = arith.constant 0 : index
    %c3_32 = arith.constant 3 : index
    %c0_33 = arith.constant 0 : index
    %c0_34 = arith.constant 0 : index
    %24 = vector.load %arg4[%c0_31, %c3_32, %c0_33, %c0_34] : memref<2x4x8x1xf32, #tpu.memory_space<vmem>>, vector<1x1x8x1xf32>
    %25 = vector.shape_cast %24 : vector<1x1x8x1xf32> to vector<8x1xf32>
    %c0_35 = arith.constant 0 : index
    %c0_36 = arith.constant 0 : index
    %c0_37 = arith.constant 0 : index
    %c0_38 = arith.constant 0 : index
    %26 = vector.load %arg3[%c0_35, %c0_36, %c0_37, %c0_38] : memref<4x1x8x2xf32, #tpu.memory_space<vmem>>, vector<1x1x8x2xf32>
    %27 = vector.shape_cast %26 : vector<1x1x8x2xf32> to vector<8x2xf32>
    %c1_39 = arith.constant 1 : index
    %c0_40 = arith.constant 0 : index
    %c0_41 = arith.constant 0 : index
    %c0_42 = arith.constant 0 : index
    %28 = vector.load %arg3[%c1_39, %c0_40, %c0_41, %c0_42] : memref<4x1x8x2xf32, #tpu.memory_space<vmem>>, vector<1x1x8x2xf32>
    %29 = vector.shape_cast %28 : vector<1x1x8x2xf32> to vector<8x2xf32>
    %30 = vector.extract_strided_slice %27 {offsets = [0, 0], sizes = [8, 1], strides = [1, 1]} : vector<8x2xf32> to vector<8x1xf32>
    %31 = vector.extract_strided_slice %27 {offsets = [0, 1], sizes = [8, 1], strides = [1, 1]} : vector<8x2xf32> to vector<8x1xf32>
    %32 = vector.extract_strided_slice %29 {offsets = [0, 0], sizes = [8, 1], strides = [1, 1]} : vector<8x2xf32> to vector<8x1xf32>
    %33 = vector.extract_strided_slice %29 {offsets = [0, 1], sizes = [8, 1], strides = [1, 1]} : vector<8x2xf32> to vector<8x1xf32>
    %c17_i32 = arith.constant 17 : i32
    %34 = tpu.dynamic_rotate %17 by %c17_i32 dim 1 : vector<8x512xf32>, i32 -> vector<8x512xf32>
    %35 = arith.mulf %34, %1 : vector<8x512xf32>
    %c16_i32 = arith.constant 16 : i32
    %36 = tpu.dynamic_rotate %17 by %c16_i32 dim 1 : vector<8x512xf32>, i32 -> vector<8x512xf32>
    %37 = arith.mulf %36, %3 : vector<8x512xf32>
    %c15_i32 = arith.constant 15 : i32
    %38 = tpu.dynamic_rotate %17 by %c15_i32 dim 1 : vector<8x512xf32>, i32 -> vector<8x512xf32>
    %39 = arith.mulf %38, %5 : vector<8x512xf32>
    %c1_i32 = arith.constant 1 : i32
    %40 = tpu.dynamic_rotate %17 by %c1_i32 dim 1 : vector<8x512xf32>, i32 -> vector<8x512xf32>
    %41 = arith.mulf %40, %7 : vector<8x512xf32>
    %c511_i32 = arith.constant 511 : i32
    %42 = tpu.dynamic_rotate %17 by %c511_i32 dim 1 : vector<8x512xf32>, i32 -> vector<8x512xf32>
    %43 = arith.mulf %42, %9 : vector<8x512xf32>
    %c497_i32 = arith.constant 497 : i32
    %44 = tpu.dynamic_rotate %17 by %c497_i32 dim 1 : vector<8x512xf32>, i32 -> vector<8x512xf32>
    %45 = arith.mulf %44, %11 : vector<8x512xf32>
    %c496_i32 = arith.constant 496 : i32
    %46 = tpu.dynamic_rotate %17 by %c496_i32 dim 1 : vector<8x512xf32>, i32 -> vector<8x512xf32>
    %47 = arith.mulf %46, %13 : vector<8x512xf32>
    %c495_i32 = arith.constant 495 : i32
    %48 = tpu.dynamic_rotate %17 by %c495_i32 dim 1 : vector<8x512xf32>, i32 -> vector<8x512xf32>
    %49 = arith.mulf %48, %15 : vector<8x512xf32>
    %50 = tpu.concatenate %35, %37, %39, %41, %17, %43, %45, %47, %49 in 0 : vector<8x512xf32>, vector<8x512xf32>, vector<8x512xf32>, vector<8x512xf32>, vector<8x512xf32>, vector<8x512xf32>, vector<8x512xf32>, vector<8x512xf32>, vector<8x512xf32> -> vector<72x512xf32>
    %cst = arith.constant dense<0.000000e+00> : vector<8x512xf32>
    %51 = tpu.matmul %19, %50, %cst {dimension_numbers = #tpu.dot_dimension_numbers<[1], [0], [0], [1], [0, 0, 1, 1], [], []>} : vector<8x72xf32>, vector<72x512xf32>, vector<8x512xf32> -> vector<8x512xf32>
    %52 = vector.extract_strided_slice %51 {offsets = [0, 0], sizes = [8, 256], strides = [1, 1]} : vector<8x512xf32> to vector<8x256xf32>
    %cst_43 = arith.constant dense<0.000000e+00> : vector<8xf32>
    %53 = vector.multi_reduction <add>, %52, %cst_43 [1] : vector<8x256xf32> to vector<8xf32>
    %54 = vector.shape_cast %53 : vector<8xf32> to vector<8x1xf32>
    %55 = arith.mulf %52, %52 : vector<8x256xf32>
    %cst_44 = arith.constant dense<0.000000e+00> : vector<8xf32>
    %56 = vector.multi_reduction <add>, %55, %cst_44 [1] : vector<8x256xf32> to vector<8xf32>
    %57 = vector.shape_cast %56 : vector<8xf32> to vector<8x1xf32>
    %cst_45 = arith.constant 2.560000e+02 : f32
    %58 = vector.broadcast %cst_45 : f32 to vector<8x1xf32>
    %59 = arith.divf %54, %58 : vector<8x1xf32>
    %cst_46 = arith.constant 2.560000e+02 : f32
    %60 = vector.broadcast %cst_46 : f32 to vector<8x1xf32>
    %61 = arith.divf %57, %60 : vector<8x1xf32>
    %62 = arith.mulf %59, %59 : vector<8x1xf32>
    %63 = arith.subf %61, %62 : vector<8x1xf32>
    %cst_47 = arith.constant 9.99999974E-6 : f32
    %64 = vector.broadcast %cst_47 : f32 to vector<8x1xf32>
    %65 = arith.addf %63, %64 : vector<8x1xf32>
    %66 = math.rsqrt %65 : vector<8x1xf32>
    %67 = arith.mulf %66, %30 : vector<8x1xf32>
    %68 = arith.mulf %59, %67 : vector<8x1xf32>
    %69 = arith.subf %32, %68 : vector<8x1xf32>
    %70 = vector.broadcast %67 : vector<8x1xf32> to vector<8x256xf32>
    %71 = arith.mulf %52, %70 : vector<8x256xf32>
    %72 = vector.broadcast %69 : vector<8x1xf32> to vector<8x256xf32>
    %73 = arith.addf %71, %72 : vector<8x256xf32>
    %74 = vector.extract_strided_slice %51 {offsets = [0, 256], sizes = [8, 256], strides = [1, 1]} : vector<8x512xf32> to vector<8x256xf32>
    %cst_48 = arith.constant dense<0.000000e+00> : vector<8xf32>
    %75 = vector.multi_reduction <add>, %74, %cst_48 [1] : vector<8x256xf32> to vector<8xf32>
    %76 = vector.shape_cast %75 : vector<8xf32> to vector<8x1xf32>
    %77 = arith.mulf %74, %74 : vector<8x256xf32>
    %cst_49 = arith.constant dense<0.000000e+00> : vector<8xf32>
    %78 = vector.multi_reduction <add>, %77, %cst_49 [1] : vector<8x256xf32> to vector<8xf32>
    %79 = vector.shape_cast %78 : vector<8xf32> to vector<8x1xf32>
    %cst_50 = arith.constant 2.560000e+02 : f32
    %80 = vector.broadcast %cst_50 : f32 to vector<8x1xf32>
    %81 = arith.divf %76, %80 : vector<8x1xf32>
    %cst_51 = arith.constant 2.560000e+02 : f32
    %82 = vector.broadcast %cst_51 : f32 to vector<8x1xf32>
    %83 = arith.divf %79, %82 : vector<8x1xf32>
    %84 = arith.mulf %81, %81 : vector<8x1xf32>
    %85 = arith.subf %83, %84 : vector<8x1xf32>
    %cst_52 = arith.constant 9.99999974E-6 : f32
    %86 = vector.broadcast %cst_52 : f32 to vector<8x1xf32>
    %87 = arith.addf %85, %86 : vector<8x1xf32>
    %88 = math.rsqrt %87 : vector<8x1xf32>
    %89 = arith.mulf %88, %31 : vector<8x1xf32>
    %90 = arith.mulf %81, %89 : vector<8x1xf32>
    %91 = arith.subf %33, %90 : vector<8x1xf32>
    %92 = vector.broadcast %89 : vector<8x1xf32> to vector<8x256xf32>
    %93 = arith.mulf %74, %92 : vector<8x256xf32>
    %94 = vector.broadcast %91 : vector<8x1xf32> to vector<8x256xf32>
    %95 = arith.addf %93, %94 : vector<8x256xf32>
    %96 = tpu.concatenate %73, %95 in 1 : vector<8x256xf32>, vector<8x256xf32> -> vector<8x512xf32>
    %97 = arith.negf %96 : vector<8x512xf32>
    %98 = math.exp %97 : vector<8x512xf32>
    %cst_53 = arith.constant 1.000000e+00 : f32
    %99 = vector.broadcast %cst_53 : f32 to vector<8x512xf32>
    %100 = arith.addf %99, %98 : vector<8x512xf32>
    %101 = arith.divf %99, %100 : vector<8x512xf32>
    %102 = arith.mulf %96, %101 : vector<8x512xf32>
    %c17_i32_54 = arith.constant 17 : i32
    %103 = tpu.dynamic_rotate %102 by %c17_i32_54 dim 1 : vector<8x512xf32>, i32 -> vector<8x512xf32>
    %104 = arith.mulf %103, %1 : vector<8x512xf32>
    %c16_i32_55 = arith.constant 16 : i32
    %105 = tpu.dynamic_rotate %102 by %c16_i32_55 dim 1 : vector<8x512xf32>, i32 -> vector<8x512xf32>
    %106 = arith.mulf %105, %3 : vector<8x512xf32>
    %c15_i32_56 = arith.constant 15 : i32
    %107 = tpu.dynamic_rotate %102 by %c15_i32_56 dim 1 : vector<8x512xf32>, i32 -> vector<8x512xf32>
    %108 = arith.mulf %107, %5 : vector<8x512xf32>
    %c1_i32_57 = arith.constant 1 : i32
    %109 = tpu.dynamic_rotate %102 by %c1_i32_57 dim 1 : vector<8x512xf32>, i32 -> vector<8x512xf32>
    %110 = arith.mulf %109, %7 : vector<8x512xf32>
    %c511_i32_58 = arith.constant 511 : i32
    %111 = tpu.dynamic_rotate %102 by %c511_i32_58 dim 1 : vector<8x512xf32>, i32 -> vector<8x512xf32>
    %112 = arith.mulf %111, %9 : vector<8x512xf32>
    %c497_i32_59 = arith.constant 497 : i32
    %113 = tpu.dynamic_rotate %102 by %c497_i32_59 dim 1 : vector<8x512xf32>, i32 -> vector<8x512xf32>
    %114 = arith.mulf %113, %11 : vector<8x512xf32>
    %c496_i32_60 = arith.constant 496 : i32
    %115 = tpu.dynamic_rotate %102 by %c496_i32_60 dim 1 : vector<8x512xf32>, i32 -> vector<8x512xf32>
    %116 = arith.mulf %115, %13 : vector<8x512xf32>
    %c495_i32_61 = arith.constant 495 : i32
    %117 = tpu.dynamic_rotate %102 by %c495_i32_61 dim 1 : vector<8x512xf32>, i32 -> vector<8x512xf32>
    %118 = arith.mulf %117, %15 : vector<8x512xf32>
    %119 = tpu.concatenate %104, %106, %108, %110, %102, %112, %114, %116, %118 in 0 : vector<8x512xf32>, vector<8x512xf32>, vector<8x512xf32>, vector<8x512xf32>, vector<8x512xf32>, vector<8x512xf32>, vector<8x512xf32>, vector<8x512xf32>, vector<8x512xf32> -> vector<72x512xf32>
    %cst_62 = arith.constant dense<0.000000e+00> : vector<8x512xf32>
    %120 = tpu.matmul %21, %119, %cst_62 {dimension_numbers = #tpu.dot_dimension_numbers<[1], [0], [0], [1], [0, 0, 1, 1], [], []>} : vector<8x72xf32>, vector<72x512xf32>, vector<8x512xf32> -> vector<8x512xf32>
    %121 = vector.extract_strided_slice %120 {offsets = [0, 0], sizes = [8, 256], strides = [1, 1]} : vector<8x512xf32> to vector<8x256xf32>
    %cst_63 = arith.constant dense<0.000000e+00> : vector<8xf32>
    %122 = vector.multi_reduction <add>, %121, %cst_63 [1] : vector<8x256xf32> to vector<8xf32>
    %123 = vector.shape_cast %122 : vector<8xf32> to vector<8x1xf32>
    %124 = arith.mulf %121, %121 : vector<8x256xf32>
    %cst_64 = arith.constant dense<0.000000e+00> : vector<8xf32>
    %125 = vector.multi_reduction <add>, %124, %cst_64 [1] : vector<8x256xf32> to vector<8xf32>
    %126 = vector.shape_cast %125 : vector<8xf32> to vector<8x1xf32>
    %cst_65 = arith.constant 2.560000e+02 : f32
    %127 = vector.broadcast %cst_65 : f32 to vector<8x1xf32>
    %128 = arith.divf %123, %127 : vector<8x1xf32>
    %cst_66 = arith.constant 2.560000e+02 : f32
    %129 = vector.broadcast %cst_66 : f32 to vector<8x1xf32>
    %130 = arith.divf %126, %129 : vector<8x1xf32>
    %131 = arith.mulf %128, %128 : vector<8x1xf32>
    %132 = arith.subf %130, %131 : vector<8x1xf32>
    %cst_67 = arith.constant 9.99999974E-6 : f32
    %133 = vector.broadcast %cst_67 : f32 to vector<8x1xf32>
    %134 = arith.addf %132, %133 : vector<8x1xf32>
    %135 = math.rsqrt %134 : vector<8x1xf32>
    %136 = arith.mulf %135, %23 : vector<8x1xf32>
    %137 = arith.mulf %128, %136 : vector<8x1xf32>
    %138 = arith.subf %25, %137 : vector<8x1xf32>
    %139 = vector.broadcast %136 : vector<8x1xf32> to vector<8x256xf32>
    %140 = arith.mulf %121, %139 : vector<8x256xf32>
    %141 = vector.broadcast %138 : vector<8x1xf32> to vector<8x256xf32>
    %142 = arith.addf %140, %141 : vector<8x256xf32>
    %143 = vector.extract_strided_slice %120 {offsets = [0, 256], sizes = [8, 256], strides = [1, 1]} : vector<8x512xf32> to vector<8x256xf32>
    %cst_68 = arith.constant dense<0.000000e+00> : vector<8xf32>
    %144 = vector.multi_reduction <add>, %143, %cst_68 [1] : vector<8x256xf32> to vector<8xf32>
    %145 = vector.shape_cast %144 : vector<8xf32> to vector<8x1xf32>
    %146 = arith.mulf %143, %143 : vector<8x256xf32>
    %cst_69 = arith.constant dense<0.000000e+00> : vector<8xf32>
    %147 = vector.multi_reduction <add>, %146, %cst_69 [1] : vector<8x256xf32> to vector<8xf32>
    %148 = vector.shape_cast %147 : vector<8xf32> to vector<8x1xf32>
    %cst_70 = arith.constant 2.560000e+02 : f32
    %149 = vector.broadcast %cst_70 : f32 to vector<8x1xf32>
    %150 = arith.divf %145, %149 : vector<8x1xf32>
    %cst_71 = arith.constant 2.560000e+02 : f32
    %151 = vector.broadcast %cst_71 : f32 to vector<8x1xf32>
    %152 = arith.divf %148, %151 : vector<8x1xf32>
    %153 = arith.mulf %150, %150 : vector<8x1xf32>
    %154 = arith.subf %152, %153 : vector<8x1xf32>
    %cst_72 = arith.constant 9.99999974E-6 : f32
    %155 = vector.broadcast %cst_72 : f32 to vector<8x1xf32>
    %156 = arith.addf %154, %155 : vector<8x1xf32>
    %157 = math.rsqrt %156 : vector<8x1xf32>
    %158 = arith.mulf %157, %23 : vector<8x1xf32>
    %159 = arith.mulf %150, %158 : vector<8x1xf32>
    %160 = arith.subf %25, %159 : vector<8x1xf32>
    %161 = vector.broadcast %158 : vector<8x1xf32> to vector<8x256xf32>
    %162 = arith.mulf %143, %161 : vector<8x256xf32>
    %163 = vector.broadcast %160 : vector<8x1xf32> to vector<8x256xf32>
    %164 = arith.addf %162, %163 : vector<8x256xf32>
    %165 = tpu.concatenate %142, %164 in 1 : vector<8x256xf32>, vector<8x256xf32> -> vector<8x512xf32>
    %166 = arith.negf %165 : vector<8x512xf32>
    %167 = math.exp %166 : vector<8x512xf32>
    %cst_73 = arith.constant 1.000000e+00 : f32
    %168 = vector.broadcast %cst_73 : f32 to vector<8x512xf32>
    %169 = arith.addf %168, %167 : vector<8x512xf32>
    %170 = arith.divf %168, %169 : vector<8x512xf32>
    %171 = arith.mulf %165, %170 : vector<8x512xf32>
    %172 = arith.addf %17, %171 : vector<8x512xf32>
    %c1_74 = arith.constant 1 : index
    %c0_75 = arith.constant 0 : index
    %c0_76 = arith.constant 0 : index
    %c0_77 = arith.constant 0 : index
    %173 = vector.load %arg5[%c1_74, %c0_75, %c0_76, %c0_77] : memref<2x2x8x72xf32, #tpu.memory_space<vmem>>, vector<1x1x8x72xf32>
    %174 = vector.shape_cast %173 : vector<1x1x8x72xf32> to vector<8x72xf32>
    %c1_78 = arith.constant 1 : index
    %c1_79 = arith.constant 1 : index
    %c0_80 = arith.constant 0 : index
    %c0_81 = arith.constant 0 : index
    %175 = vector.load %arg5[%c1_78, %c1_79, %c0_80, %c0_81] : memref<2x2x8x72xf32, #tpu.memory_space<vmem>>, vector<1x1x8x72xf32>
    %176 = vector.shape_cast %175 : vector<1x1x8x72xf32> to vector<8x72xf32>
    %c1_82 = arith.constant 1 : index
    %c2_83 = arith.constant 2 : index
    %c0_84 = arith.constant 0 : index
    %c0_85 = arith.constant 0 : index
    %177 = vector.load %arg4[%c1_82, %c2_83, %c0_84, %c0_85] : memref<2x4x8x1xf32, #tpu.memory_space<vmem>>, vector<1x1x8x1xf32>
    %178 = vector.shape_cast %177 : vector<1x1x8x1xf32> to vector<8x1xf32>
    %c1_86 = arith.constant 1 : index
    %c3_87 = arith.constant 3 : index
    %c0_88 = arith.constant 0 : index
    %c0_89 = arith.constant 0 : index
    %179 = vector.load %arg4[%c1_86, %c3_87, %c0_88, %c0_89] : memref<2x4x8x1xf32, #tpu.memory_space<vmem>>, vector<1x1x8x1xf32>
    %180 = vector.shape_cast %179 : vector<1x1x8x1xf32> to vector<8x1xf32>
    %c2_90 = arith.constant 2 : index
    %c0_91 = arith.constant 0 : index
    %c0_92 = arith.constant 0 : index
    %c0_93 = arith.constant 0 : index
    %181 = vector.load %arg3[%c2_90, %c0_91, %c0_92, %c0_93] : memref<4x1x8x2xf32, #tpu.memory_space<vmem>>, vector<1x1x8x2xf32>
    %182 = vector.shape_cast %181 : vector<1x1x8x2xf32> to vector<8x2xf32>
    %c3_94 = arith.constant 3 : index
    %c0_95 = arith.constant 0 : index
    %c0_96 = arith.constant 0 : index
    %c0_97 = arith.constant 0 : index
    %183 = vector.load %arg3[%c3_94, %c0_95, %c0_96, %c0_97] : memref<4x1x8x2xf32, #tpu.memory_space<vmem>>, vector<1x1x8x2xf32>
    %184 = vector.shape_cast %183 : vector<1x1x8x2xf32> to vector<8x2xf32>
    %185 = vector.extract_strided_slice %182 {offsets = [0, 0], sizes = [8, 1], strides = [1, 1]} : vector<8x2xf32> to vector<8x1xf32>
    %186 = vector.extract_strided_slice %182 {offsets = [0, 1], sizes = [8, 1], strides = [1, 1]} : vector<8x2xf32> to vector<8x1xf32>
    %187 = vector.extract_strided_slice %184 {offsets = [0, 0], sizes = [8, 1], strides = [1, 1]} : vector<8x2xf32> to vector<8x1xf32>
    %188 = vector.extract_strided_slice %184 {offsets = [0, 1], sizes = [8, 1], strides = [1, 1]} : vector<8x2xf32> to vector<8x1xf32>
    %c17_i32_98 = arith.constant 17 : i32
    %189 = tpu.dynamic_rotate %172 by %c17_i32_98 dim 1 : vector<8x512xf32>, i32 -> vector<8x512xf32>
    %190 = arith.mulf %189, %1 : vector<8x512xf32>
    %c16_i32_99 = arith.constant 16 : i32
    %191 = tpu.dynamic_rotate %172 by %c16_i32_99 dim 1 : vector<8x512xf32>, i32 -> vector<8x512xf32>
    %192 = arith.mulf %191, %3 : vector<8x512xf32>
    %c15_i32_100 = arith.constant 15 : i32
    %193 = tpu.dynamic_rotate %172 by %c15_i32_100 dim 1 : vector<8x512xf32>, i32 -> vector<8x512xf32>
    %194 = arith.mulf %193, %5 : vector<8x512xf32>
    %c1_i32_101 = arith.constant 1 : i32
    %195 = tpu.dynamic_rotate %172 by %c1_i32_101 dim 1 : vector<8x512xf32>, i32 -> vector<8x512xf32>
    %196 = arith.mulf %195, %7 : vector<8x512xf32>
    %c511_i32_102 = arith.constant 511 : i32
    %197 = tpu.dynamic_rotate %172 by %c511_i32_102 dim 1 : vector<8x512xf32>, i32 -> vector<8x512xf32>
    %198 = arith.mulf %197, %9 : vector<8x512xf32>
    %c497_i32_103 = arith.constant 497 : i32
    %199 = tpu.dynamic_rotate %172 by %c497_i32_103 dim 1 : vector<8x512xf32>, i32 -> vector<8x512xf32>
    %200 = arith.mulf %199, %11 : vector<8x512xf32>
    %c496_i32_104 = arith.constant 496 : i32
    %201 = tpu.dynamic_rotate %172 by %c496_i32_104 dim 1 : vector<8x512xf32>, i32 -> vector<8x512xf32>
    %202 = arith.mulf %201, %13 : vector<8x512xf32>
    %c495_i32_105 = arith.constant 495 : i32
    %203 = tpu.dynamic_rotate %172 by %c495_i32_105 dim 1 : vector<8x512xf32>, i32 -> vector<8x512xf32>
    %204 = arith.mulf %203, %15 : vector<8x512xf32>
    %205 = tpu.concatenate %190, %192, %194, %196, %172, %198, %200, %202, %204 in 0 : vector<8x512xf32>, vector<8x512xf32>, vector<8x512xf32>, vector<8x512xf32>, vector<8x512xf32>, vector<8x512xf32>, vector<8x512xf32>, vector<8x512xf32>, vector<8x512xf32> -> vector<72x512xf32>
    %cst_106 = arith.constant dense<0.000000e+00> : vector<8x512xf32>
    %206 = tpu.matmul %174, %205, %cst_106 {dimension_numbers = #tpu.dot_dimension_numbers<[1], [0], [0], [1], [0, 0, 1, 1], [], []>} : vector<8x72xf32>, vector<72x512xf32>, vector<8x512xf32> -> vector<8x512xf32>
    %207 = vector.extract_strided_slice %206 {offsets = [0, 0], sizes = [8, 256], strides = [1, 1]} : vector<8x512xf32> to vector<8x256xf32>
    %cst_107 = arith.constant dense<0.000000e+00> : vector<8xf32>
    %208 = vector.multi_reduction <add>, %207, %cst_107 [1] : vector<8x256xf32> to vector<8xf32>
    %209 = vector.shape_cast %208 : vector<8xf32> to vector<8x1xf32>
    %210 = arith.mulf %207, %207 : vector<8x256xf32>
    %cst_108 = arith.constant dense<0.000000e+00> : vector<8xf32>
    %211 = vector.multi_reduction <add>, %210, %cst_108 [1] : vector<8x256xf32> to vector<8xf32>
    %212 = vector.shape_cast %211 : vector<8xf32> to vector<8x1xf32>
    %cst_109 = arith.constant 2.560000e+02 : f32
    %213 = vector.broadcast %cst_109 : f32 to vector<8x1xf32>
    %214 = arith.divf %209, %213 : vector<8x1xf32>
    %cst_110 = arith.constant 2.560000e+02 : f32
    %215 = vector.broadcast %cst_110 : f32 to vector<8x1xf32>
    %216 = arith.divf %212, %215 : vector<8x1xf32>
    %217 = arith.mulf %214, %214 : vector<8x1xf32>
    %218 = arith.subf %216, %217 : vector<8x1xf32>
    %cst_111 = arith.constant 9.99999974E-6 : f32
    %219 = vector.broadcast %cst_111 : f32 to vector<8x1xf32>
    %220 = arith.addf %218, %219 : vector<8x1xf32>
    %221 = math.rsqrt %220 : vector<8x1xf32>
    %222 = arith.mulf %221, %185 : vector<8x1xf32>
    %223 = arith.mulf %214, %222 : vector<8x1xf32>
    %224 = arith.subf %187, %223 : vector<8x1xf32>
    %225 = vector.broadcast %222 : vector<8x1xf32> to vector<8x256xf32>
    %226 = arith.mulf %207, %225 : vector<8x256xf32>
    %227 = vector.broadcast %224 : vector<8x1xf32> to vector<8x256xf32>
    %228 = arith.addf %226, %227 : vector<8x256xf32>
    %229 = vector.extract_strided_slice %206 {offsets = [0, 256], sizes = [8, 256], strides = [1, 1]} : vector<8x512xf32> to vector<8x256xf32>
    %cst_112 = arith.constant dense<0.000000e+00> : vector<8xf32>
    %230 = vector.multi_reduction <add>, %229, %cst_112 [1] : vector<8x256xf32> to vector<8xf32>
    %231 = vector.shape_cast %230 : vector<8xf32> to vector<8x1xf32>
    %232 = arith.mulf %229, %229 : vector<8x256xf32>
    %cst_113 = arith.constant dense<0.000000e+00> : vector<8xf32>
    %233 = vector.multi_reduction <add>, %232, %cst_113 [1] : vector<8x256xf32> to vector<8xf32>
    %234 = vector.shape_cast %233 : vector<8xf32> to vector<8x1xf32>
    %cst_114 = arith.constant 2.560000e+02 : f32
    %235 = vector.broadcast %cst_114 : f32 to vector<8x1xf32>
    %236 = arith.divf %231, %235 : vector<8x1xf32>
    %cst_115 = arith.constant 2.560000e+02 : f32
    %237 = vector.broadcast %cst_115 : f32 to vector<8x1xf32>
    %238 = arith.divf %234, %237 : vector<8x1xf32>
    %239 = arith.mulf %236, %236 : vector<8x1xf32>
    %240 = arith.subf %238, %239 : vector<8x1xf32>
    %cst_116 = arith.constant 9.99999974E-6 : f32
    %241 = vector.broadcast %cst_116 : f32 to vector<8x1xf32>
    %242 = arith.addf %240, %241 : vector<8x1xf32>
    %243 = math.rsqrt %242 : vector<8x1xf32>
    %244 = arith.mulf %243, %186 : vector<8x1xf32>
    %245 = arith.mulf %236, %244 : vector<8x1xf32>
    %246 = arith.subf %188, %245 : vector<8x1xf32>
    %247 = vector.broadcast %244 : vector<8x1xf32> to vector<8x256xf32>
    %248 = arith.mulf %229, %247 : vector<8x256xf32>
    %249 = vector.broadcast %246 : vector<8x1xf32> to vector<8x256xf32>
    %250 = arith.addf %248, %249 : vector<8x256xf32>
    %251 = tpu.concatenate %228, %250 in 1 : vector<8x256xf32>, vector<8x256xf32> -> vector<8x512xf32>
    %252 = arith.negf %251 : vector<8x512xf32>
    %253 = math.exp %252 : vector<8x512xf32>
    %cst_117 = arith.constant 1.000000e+00 : f32
    %254 = vector.broadcast %cst_117 : f32 to vector<8x512xf32>
    %255 = arith.addf %254, %253 : vector<8x512xf32>
    %256 = arith.divf %254, %255 : vector<8x512xf32>
    %257 = arith.mulf %251, %256 : vector<8x512xf32>
    %c17_i32_118 = arith.constant 17 : i32
    %258 = tpu.dynamic_rotate %257 by %c17_i32_118 dim 1 : vector<8x512xf32>, i32 -> vector<8x512xf32>
    %259 = arith.mulf %258, %1 : vector<8x512xf32>
    %c16_i32_119 = arith.constant 16 : i32
    %260 = tpu.dynamic_rotate %257 by %c16_i32_119 dim 1 : vector<8x512xf32>, i32 -> vector<8x512xf32>
    %261 = arith.mulf %260, %3 : vector<8x512xf32>
    %c15_i32_120 = arith.constant 15 : i32
    %262 = tpu.dynamic_rotate %257 by %c15_i32_120 dim 1 : vector<8x512xf32>, i32 -> vector<8x512xf32>
    %263 = arith.mulf %262, %5 : vector<8x512xf32>
    %c1_i32_121 = arith.constant 1 : i32
    %264 = tpu.dynamic_rotate %257 by %c1_i32_121 dim 1 : vector<8x512xf32>, i32 -> vector<8x512xf32>
    %265 = arith.mulf %264, %7 : vector<8x512xf32>
    %c511_i32_122 = arith.constant 511 : i32
    %266 = tpu.dynamic_rotate %257 by %c511_i32_122 dim 1 : vector<8x512xf32>, i32 -> vector<8x512xf32>
    %267 = arith.mulf %266, %9 : vector<8x512xf32>
    %c497_i32_123 = arith.constant 497 : i32
    %268 = tpu.dynamic_rotate %257 by %c497_i32_123 dim 1 : vector<8x512xf32>, i32 -> vector<8x512xf32>
    %269 = arith.mulf %268, %11 : vector<8x512xf32>
    %c496_i32_124 = arith.constant 496 : i32
    %270 = tpu.dynamic_rotate %257 by %c496_i32_124 dim 1 : vector<8x512xf32>, i32 -> vector<8x512xf32>
    %271 = arith.mulf %270, %13 : vector<8x512xf32>
    %c495_i32_125 = arith.constant 495 : i32
    %272 = tpu.dynamic_rotate %257 by %c495_i32_125 dim 1 : vector<8x512xf32>, i32 -> vector<8x512xf32>
    %273 = arith.mulf %272, %15 : vector<8x512xf32>
    %274 = tpu.concatenate %259, %261, %263, %265, %257, %267, %269, %271, %273 in 0 : vector<8x512xf32>, vector<8x512xf32>, vector<8x512xf32>, vector<8x512xf32>, vector<8x512xf32>, vector<8x512xf32>, vector<8x512xf32>, vector<8x512xf32>, vector<8x512xf32> -> vector<72x512xf32>
    %cst_126 = arith.constant dense<0.000000e+00> : vector<8x512xf32>
    %275 = tpu.matmul %176, %274, %cst_126 {dimension_numbers = #tpu.dot_dimension_numbers<[1], [0], [0], [1], [0, 0, 1, 1], [], []>} : vector<8x72xf32>, vector<72x512xf32>, vector<8x512xf32> -> vector<8x512xf32>
    %276 = vector.extract_strided_slice %275 {offsets = [0, 0], sizes = [8, 256], strides = [1, 1]} : vector<8x512xf32> to vector<8x256xf32>
    %cst_127 = arith.constant dense<0.000000e+00> : vector<8xf32>
    %277 = vector.multi_reduction <add>, %276, %cst_127 [1] : vector<8x256xf32> to vector<8xf32>
    %278 = vector.shape_cast %277 : vector<8xf32> to vector<8x1xf32>
    %279 = arith.mulf %276, %276 : vector<8x256xf32>
    %cst_128 = arith.constant dense<0.000000e+00> : vector<8xf32>
    %280 = vector.multi_reduction <add>, %279, %cst_128 [1] : vector<8x256xf32> to vector<8xf32>
    %281 = vector.shape_cast %280 : vector<8xf32> to vector<8x1xf32>
    %cst_129 = arith.constant 2.560000e+02 : f32
    %282 = vector.broadcast %cst_129 : f32 to vector<8x1xf32>
    %283 = arith.divf %278, %282 : vector<8x1xf32>
    %cst_130 = arith.constant 2.560000e+02 : f32
    %284 = vector.broadcast %cst_130 : f32 to vector<8x1xf32>
    %285 = arith.divf %281, %284 : vector<8x1xf32>
    %286 = arith.mulf %283, %283 : vector<8x1xf32>
    %287 = arith.subf %285, %286 : vector<8x1xf32>
    %cst_131 = arith.constant 9.99999974E-6 : f32
    %288 = vector.broadcast %cst_131 : f32 to vector<8x1xf32>
    %289 = arith.addf %287, %288 : vector<8x1xf32>
    %290 = math.rsqrt %289 : vector<8x1xf32>
    %291 = arith.mulf %290, %178 : vector<8x1xf32>
    %292 = arith.mulf %283, %291 : vector<8x1xf32>
    %293 = arith.subf %180, %292 : vector<8x1xf32>
    %294 = vector.broadcast %291 : vector<8x1xf32> to vector<8x256xf32>
    %295 = arith.mulf %276, %294 : vector<8x256xf32>
    %296 = vector.broadcast %293 : vector<8x1xf32> to vector<8x256xf32>
    %297 = arith.addf %295, %296 : vector<8x256xf32>
    %298 = vector.extract_strided_slice %275 {offsets = [0, 256], sizes = [8, 256], strides = [1, 1]} : vector<8x512xf32> to vector<8x256xf32>
    %cst_132 = arith.constant dense<0.000000e+00> : vector<8xf32>
    %299 = vector.multi_reduction <add>, %298, %cst_132 [1] : vector<8x256xf32> to vector<8xf32>
    %300 = vector.shape_cast %299 : vector<8xf32> to vector<8x1xf32>
    %301 = arith.mulf %298, %298 : vector<8x256xf32>
    %cst_133 = arith.constant dense<0.000000e+00> : vector<8xf32>
    %302 = vector.multi_reduction <add>, %301, %cst_133 [1] : vector<8x256xf32> to vector<8xf32>
    %303 = vector.shape_cast %302 : vector<8xf32> to vector<8x1xf32>
    %cst_134 = arith.constant 2.560000e+02 : f32
    %304 = vector.broadcast %cst_134 : f32 to vector<8x1xf32>
    %305 = arith.divf %300, %304 : vector<8x1xf32>
    %cst_135 = arith.constant 2.560000e+02 : f32
    %306 = vector.broadcast %cst_135 : f32 to vector<8x1xf32>
    %307 = arith.divf %303, %306 : vector<8x1xf32>
    %308 = arith.mulf %305, %305 : vector<8x1xf32>
    %309 = arith.subf %307, %308 : vector<8x1xf32>
    %cst_136 = arith.constant 9.99999974E-6 : f32
    %310 = vector.broadcast %cst_136 : f32 to vector<8x1xf32>
    %311 = arith.addf %309, %310 : vector<8x1xf32>
    %312 = math.rsqrt %311 : vector<8x1xf32>
    %313 = arith.mulf %312, %178 : vector<8x1xf32>
    %314 = arith.mulf %305, %313 : vector<8x1xf32>
    %315 = arith.subf %180, %314 : vector<8x1xf32>
    %316 = vector.broadcast %313 : vector<8x1xf32> to vector<8x256xf32>
    %317 = arith.mulf %298, %316 : vector<8x256xf32>
    %318 = vector.broadcast %315 : vector<8x1xf32> to vector<8x256xf32>
    %319 = arith.addf %317, %318 : vector<8x256xf32>
    %320 = tpu.concatenate %297, %319 in 1 : vector<8x256xf32>, vector<8x256xf32> -> vector<8x512xf32>
    %321 = arith.negf %320 : vector<8x512xf32>
    %322 = math.exp %321 : vector<8x512xf32>
    %cst_137 = arith.constant 1.000000e+00 : f32
    %323 = vector.broadcast %cst_137 : f32 to vector<8x512xf32>
    %324 = arith.addf %323, %322 : vector<8x512xf32>
    %325 = arith.divf %323, %324 : vector<8x512xf32>
    %326 = arith.mulf %320, %325 : vector<8x512xf32>
    %327 = arith.addf %172, %326 : vector<8x512xf32>
    %c0_138 = arith.constant 0 : index
    %c0_139 = arith.constant 0 : index
    %c0_140 = arith.constant 0 : index
    %328 = vector.load %arg9[%c0_138, %c0_139, %c0_140] : memref<1x8x512xf32, #tpu.memory_space<vmem>>, vector<1x8x512xf32>
    %329 = vector.shape_cast %328 : vector<1x8x512xf32> to vector<8x512xf32>
    %330 = vector.shape_cast %327 : vector<8x512xf32> to vector<1x8x512xf32>
    tpu.vector_store %arg9[%c0_138, %c0_139, %c0_140], %330 {strides = array<i32>} : memref<1x8x512xf32, #tpu.memory_space<vmem>>, vector<1x8x512xf32>,
    %c0_141 = arith.constant 0 : index
    %c0_142 = arith.constant 0 : index
    %331 = vector.load %arg6[%c0_141, %c0_142] : memref<16x72xf32, #tpu.memory_space<vmem>>, vector<16x72xf32>
    %c0_143 = arith.constant 0 : index
    %c0_144 = arith.constant 0 : index
    %332 = vector.load %arg7[%c0_143, %c0_144] : memref<16x1xf32, #tpu.memory_space<vmem>>, vector<16x1xf32>
    %c17_i32_145 = arith.constant 17 : i32
    %333 = tpu.dynamic_rotate %327 by %c17_i32_145 dim 1 : vector<8x512xf32>, i32 -> vector<8x512xf32>
    %334 = arith.mulf %333, %1 : vector<8x512xf32>
    %c16_i32_146 = arith.constant 16 : i32
    %335 = tpu.dynamic_rotate %327 by %c16_i32_146 dim 1 : vector<8x512xf32>, i32 -> vector<8x512xf32>
    %336 = arith.mulf %335, %3 : vector<8x512xf32>
    %c15_i32_147 = arith.constant 15 : i32
    %337 = tpu.dynamic_rotate %327 by %c15_i32_147 dim 1 : vector<8x512xf32>, i32 -> vector<8x512xf32>
    %338 = arith.mulf %337, %5 : vector<8x512xf32>
    %c1_i32_148 = arith.constant 1 : i32
    %339 = tpu.dynamic_rotate %327 by %c1_i32_148 dim 1 : vector<8x512xf32>, i32 -> vector<8x512xf32>
    %340 = arith.mulf %339, %7 : vector<8x512xf32>
    %c511_i32_149 = arith.constant 511 : i32
    %341 = tpu.dynamic_rotate %327 by %c511_i32_149 dim 1 : vector<8x512xf32>, i32 -> vector<8x512xf32>
    %342 = arith.mulf %341, %9 : vector<8x512xf32>
    %c497_i32_150 = arith.constant 497 : i32
    %343 = tpu.dynamic_rotate %327 by %c497_i32_150 dim 1 : vector<8x512xf32>, i32 -> vector<8x512xf32>
    %344 = arith.mulf %343, %11 : vector<8x512xf32>
    %c496_i32_151 = arith.constant 496 : i32
    %345 = tpu.dynamic_rotate %327 by %c496_i32_151 dim 1 : vector<8x512xf32>, i32 -> vector<8x512xf32>
    %346 = arith.mulf %345, %13 : vector<8x512xf32>
    %c495_i32_152 = arith.constant 495 : i32
    %347 = tpu.dynamic_rotate %327 by %c495_i32_152 dim 1 : vector<8x512xf32>, i32 -> vector<8x512xf32>
    %348 = arith.mulf %347, %15 : vector<8x512xf32>
    %349 = tpu.concatenate %334, %336, %338, %340, %327, %342, %344, %346, %348 in 0 : vector<8x512xf32>, vector<8x512xf32>, vector<8x512xf32>, vector<8x512xf32>, vector<8x512xf32>, vector<8x512xf32>, vector<8x512xf32>, vector<8x512xf32>, vector<8x512xf32> -> vector<72x512xf32>
    %cst_153 = arith.constant dense<0.000000e+00> : vector<16x512xf32>
    %350 = tpu.matmul %331, %349, %cst_153 {dimension_numbers = #tpu.dot_dimension_numbers<[1], [0], [0], [1], [0, 0, 1, 1], [], []>} : vector<16x72xf32>, vector<72x512xf32>, vector<16x512xf32> -> vector<16x512xf32>
    %351 = vector.broadcast %332 : vector<16x1xf32> to vector<16x512xf32>
    %352 = arith.addf %350, %351 : vector<16x512xf32>
    %c0_154 = arith.constant 0 : index
    %c0_155 = arith.constant 0 : index
    %c0_156 = arith.constant 0 : index
    %353 = vector.load %arg8[%c0_154, %c0_155, %c0_156] : memref<1x16x512xf32, #tpu.memory_space<vmem>>, vector<1x16x512xf32>
    %354 = vector.shape_cast %353 : vector<1x16x512xf32> to vector<16x512xf32>
    %355 = vector.shape_cast %352 : vector<16x512xf32> to vector<1x16x512xf32>
    tpu.vector_store %arg8[%c0_154, %c0_155, %c0_156], %355 {strides = array<i32>} : memref<1x16x512xf32, #tpu.memory_space<vmem>>, vector<1x16x512xf32>,
    return
  }
  func.func @transform_0(%arg0: i32) -> (i32, i32, i32) {
    %c0_i32 = arith.constant 0 : i32
    %c0_i32_0 = arith.constant 0 : i32
    %c0_i32_1 = arith.constant 0 : i32
    return %arg0, %c0_i32, %c0_i32_0 : i32, i32, i32
  }
  func.func @transform_1(%arg0: i32) -> (i32, i32, i32) {
    %c0_i32 = arith.constant 0 : i32
    %c0_i32_0 = arith.constant 0 : i32
    %c0_i32_1 = arith.constant 0 : i32
    %c0_i32_2 = arith.constant 0 : i32
    return %c0_i32, %c0_i32_0, %c0_i32_1 : i32, i32, i32
  }
  func.func @transform_2(%arg0: i32) -> (i32, i32, i32, i32) {
    %c0_i32 = arith.constant 0 : i32
    %c0_i32_0 = arith.constant 0 : i32
    %c0_i32_1 = arith.constant 0 : i32
    %c0_i32_2 = arith.constant 0 : i32
    return %c0_i32, %arg0, %c0_i32_0, %c0_i32_1 : i32, i32, i32, i32
  }
  func.func @transform_3(%arg0: i32) -> (i32, i32, i32, i32) {
    %c0_i32 = arith.constant 0 : i32
    %c0_i32_0 = arith.constant 0 : i32
    %c0_i32_1 = arith.constant 0 : i32
    %c0_i32_2 = arith.constant 0 : i32
    %c0_i32_3 = arith.constant 0 : i32
    return %c0_i32, %c0_i32_0, %c0_i32_1, %c0_i32_2 : i32, i32, i32, i32
  }
  func.func @transform_4(%arg0: i32) -> (i32, i32, i32, i32) {
    %c0_i32 = arith.constant 0 : i32
    %c0_i32_0 = arith.constant 0 : i32
    %c0_i32_1 = arith.constant 0 : i32
    %c0_i32_2 = arith.constant 0 : i32
    %c0_i32_3 = arith.constant 0 : i32
    return %c0_i32, %c0_i32_0, %c0_i32_1, %c0_i32_2 : i32, i32, i32, i32
  }
  func.func @transform_5(%arg0: i32) -> (i32, i32) {
    %c0_i32 = arith.constant 0 : i32
    %c0_i32_0 = arith.constant 0 : i32
    %c0_i32_1 = arith.constant 0 : i32
    return %c0_i32, %c0_i32_0 : i32, i32
  }
  func.func @transform_6(%arg0: i32) -> (i32, i32) {
    %c0_i32 = arith.constant 0 : i32
    %c0_i32_0 = arith.constant 0 : i32
    %c0_i32_1 = arith.constant 0 : i32
    return %c0_i32, %c0_i32_0 : i32, i32
  }
  func.func @transform_7(%arg0: i32) -> (i32, i32, i32) {
    %c0_i32 = arith.constant 0 : i32
    %c0_i32_0 = arith.constant 0 : i32
    %c0_i32_1 = arith.constant 0 : i32
    return %arg0, %c0_i32, %c0_i32_0 : i32, i32, i32
  }
  func.func @transform_8(%arg0: i32) -> (i32, i32, i32) {
    %c0_i32 = arith.constant 0 : i32
    %c0_i32_0 = arith.constant 0 : i32
    %c0_i32_1 = arith.constant 0 : i32
    return %arg0, %c0_i32, %c0_i32_0 : i32, i32, i32
  }
}

</mosaic_0001>

<llo_original>
// kernel: denoising_block.1
$region0: #{denoising_block.1}
  #allocation0 [shape = 'u32[]', space=smem, size = 0x4, offset = 0x4, fixed_abs, tag = 'smem constant byte address 0x4 - core index']
  #allocation1 [shape = 'u32[144,128]{1,0:T(1,128)}', space=vmem, size = 0x12000, scoped, tag = 'internal scratch']
  %s0 = inlined_call_operand.vmem [shape: f32[1,8,512], index: 0, kind: input, shape index: {}]
  %s1 = inlined_call_operand.vmem [shape: f32[9,8,512], index: 1, kind: input, shape index: {}]
  %s2 = inlined_call_operand.vmem [shape: f32[4,1,8,2], index: 2, kind: input, shape index: {}]
  %s3 = inlined_call_operand.vmem [shape: f32[2,4,8,1], index: 3, kind: input, shape index: {}]
  %s4 = inlined_call_operand.vmem [shape: f32[2,2,8,72], index: 4, kind: input, shape index: {}]
  %s5 = inlined_call_operand.vmem [shape: f32[16,72], index: 5, kind: input, shape index: {}]
  %s6 = inlined_call_operand.vmem [shape: f32[16,1], index: 6, kind: input, shape index: {}]
  %s7 = inlined_call_operand.vmem [shape: f32[1,16,512], index: 7, kind: output, shape index: {0}]
  %s8 = inlined_call_operand.vmem [shape: f32[1,8,512], index: 8, kind: output, shape index: {1}]
  %9 = xla_tuple %s7, %s8
  %s10 = sld [smem:[#allocation0]]
  $region46: #{denoising_block.1} parent=0
    _
  %s12 = ssub.s32 1, %s10
  %s13 = scalar_select 0, %s12, %s10
  // Predicated region
  $region2: #{denoising_block.1} parent=0 // pred_check
    _
  $region3: #{denoising_block.1} parent=0 // pred_check_branch
    %15 = sbr.rel (0) target = $region5
  $region4: #{denoising_block.1} parent=0 // pred_region
    _
  $region5: #{denoising_block.1} parent=0 // pred_fallthru
    _
  // Predicated region
  $region6: #{denoising_block.1} parent=0 // pred_check
    _
  $region7: #{denoising_block.1} parent=0 // pred_check_branch
    %17 = sbr.rel (0) target = $region9
  $region8: #{denoising_block.1} parent=0 // pred_region
    _
  $region9: #{denoising_block.1} parent=0 // pred_fallthru
    _
  // Predicated region
  $region10: #{denoising_block.1} parent=0 // pred_check
    _
  $region11: #{denoising_block.1} parent=0 // pred_check_branch
    %19 = sbr.rel (0) target = $region13
  $region12: #{denoising_block.1} parent=0 // pred_region
    _
  $region13: #{denoising_block.1} parent=0 // pred_fallthru
    _
  // Predicated region
  $region14: #{denoising_block.1} parent=0 // pred_check
    _
  $region15: #{denoising_block.1} parent=0 // pred_check_branch
    %21 = sbr.rel (0) target = $region17
  $region16: #{denoising_block.1} parent=0 // pred_region
    _
  $region17: #{denoising_block.1} parent=0 // pred_fallthru
    _
  // Predicated region
  $region18: #{denoising_block.1} parent=0 // pred_check
    _
  $region19: #{denoising_block.1} parent=0 // pred_check_branch
    %23 = sbr.rel (0) target = $region21
  $region20: #{denoising_block.1} parent=0 // pred_region
    _
  $region21: #{denoising_block.1} parent=0 // pred_fallthru
    _
  // Predicated region
  $region22: #{denoising_block.1} parent=0 // pred_check
    _
  $region23: #{denoising_block.1} parent=0 // pred_check_branch
    %25 = sbr.rel (0) target = $region25
  $region24: #{denoising_block.1} parent=0 // pred_region
    _
  $region25: #{denoising_block.1} parent=0 // pred_fallthru
    _
  // Predicated region
  $region26: #{denoising_block.1} parent=0 // pred_check
    _
  $region27: #{denoising_block.1} parent=0 // pred_check_branch
    %27 = sbr.rel (0) target = $region29
  $region28: #{denoising_block.1} parent=0 // pred_region
    _
  $region29: #{denoising_block.1} parent=0 // pred_fallthru
    _
  %v28 = vld [vmem:[%s1] sm:$0xff]
  %v29 = vld [vmem:[%s1 + $0x8] sm:$0xff]
  %v30 = vld [vmem:[%s1 + $0x10] sm:$0xff]
  %v31 = vld [vmem:[%s1 + $0x18] sm:$0xff]
  %s32 = scalar_lea.vmem %s1, 32
  %v33 = vld [vmem:[%s32] sm:$0xff]
  %v34 = vld [vmem:[%s32 + $0x8] sm:$0xff]
  %v35 = vld [vmem:[%s32 + $0x10] sm:$0xff]
  %v36 = vld [vmem:[%s32 + $0x18] sm:$0xff]
  %s37 = scalar_lea.vmem %s1, 64
  %v38 = vld [vmem:[%s37] sm:$0xff]
  %v39 = vld [vmem:[%s37 + $0x8] sm:$0xff]
  %v40 = vld [vmem:[%s37 + $0x10] sm:$0xff]
  %v41 = vld [vmem:[%s37 + $0x18] sm:$0xff]
  %s42 = scalar_lea.vmem %s1, 96
  %v43 = vld [vmem:[%s42] sm:$0xff]
  %v44 = vld [vmem:[%s42 + $0x8] sm:$0xff]
  %v45 = vld [vmem:[%s42 + $0x10] sm:$0xff]
  %v46 = vld [vmem:[%s42 + $0x18] sm:$0xff]
  %s47 = scalar_lea.vmem %s1, 160
  %v48 = vld [vmem:[%s47] sm:$0xff]
  %v49 = vld [vmem:[%s47 + $0x8] sm:$0xff]
  %v50 = vld [vmem:[%s47 + $0x10] sm:$0xff]
  %v51 = vld [vmem:[%s47 + $0x18] sm:$0xff]
  %s52 = scalar_lea.vmem %s1, 192
  %v53 = vld [vmem:[%s52] sm:$0xff]
  %v54 = vld [vmem:[%s52 + $0x8] sm:$0xff]
  %v55 = vld [vmem:[%s52 + $0x10] sm:$0xff]
  %v56 = vld [vmem:[%s52 + $0x18] sm:$0xff]
  %s57 = scalar_lea.vmem %s1, 224
  %v58 = vld [vmem:[%s57] sm:$0xff]
  %v59 = vld [vmem:[%s57 + $0x8] sm:$0xff]
  %v60 = vld [vmem:[%s57 + $0x10] sm:$0xff]
  %v61 = vld [vmem:[%s57 + $0x18] sm:$0xff]
  %s62 = scalar_lea.vmem %s1, 256
  %v63 = vld [vmem:[%s62] sm:$0xff]
  %v64 = vld [vmem:[%s62 + $0x8] sm:$0xff]
  %v65 = vld [vmem:[%s62 + $0x10] sm:$0xff]
  %v66 = vld [vmem:[%s62 + $0x18] sm:$0xff]
  %v67 = vld [vmem:[%s0] sm:$0xff]
  %v68 = vld [vmem:[%s0 + $0x8] sm:$0xff]
  %v69 = vld [vmem:[%s0 + $0x10] sm:$0xff]
  %v70 = vld [vmem:[%s0 + $0x18] sm:$0xff]
  %v71 = vld [vmem:[%s4] sm:$0xff]
  %s72 = scalar_lea.vmem %s4, 8
  %v73 = vld [vmem:[%s72] sm:$0xff]
  %s74 = scalar_lea.vmem %s3, 16
  %v75 = vld [vmem:[%s74] sm:$0xff]
  %s76 = scalar_lea.vmem %s3, 24
  %v77 = vld [vmem:[%s76] sm:$0xff]
  %v78 = vld [vmem:[%s2] sm:$0xff]
  %s79 = scalar_lea.vmem %s2, 8
  %v80 = vld [vmem:[%s79] sm:$0xff]
  %81 = vrot.lane.b32.xlu0 %v67, 17
  %v82 = vpop.permute.xlu0 %81
  %83 = vrot.lane.b32.xlu0 %v68, 17
  %v84 = vpop.permute.xlu0 %83
  %85 = vrot.lane.b32.xlu0 %v69, 17
  %v86 = vpop.permute.xlu0 %85
  %87 = vrot.lane.b32.xlu0 %v70, 17
  %v88 = vpop.permute.xlu0 %87
  %v89 = vlaneseq
  %v90 = vand.u32 %v89, 127
  %vm91 = vcmp.lt.s32.totalorder %v90, 17
  %v92 = vsel %vm91, %v86, %v88
  %v93 = vsel %vm91, %v84, %v86
  %v94 = vsel %vm91, %v82, %v84
  %v95 = vsel %vm91, %v88, %v82
  %v96 = vmul.f32 %v95, %v28
  %v97 = vmul.f32 %v94, %v29
  %v98 = vmul.f32 %v93, %v30
  %v99 = vmul.f32 %v92, %v31
  %100 = vrot.lane.b32.xlu0 %v67, 16
  %v101 = vpop.permute.xlu0 %100
  %102 = vrot.lane.b32.xlu0 %v68, 16
  %v103 = vpop.permute.xlu0 %102
  %104 = vrot.lane.b32.xlu0 %v69, 16
  %v105 = vpop.permute.xlu0 %104
  %106 = vrot.lane.b32.xlu0 %v70, 16
  %v107 = vpop.permute.xlu0 %106
  %vm108 = vcmp.lt.s32.totalorder %v90, 16
  %v109 = vsel %vm108, %v105, %v107
  %v110 = vsel %vm108, %v103, %v105
  %v111 = vsel %vm108, %v101, %v103
  %v112 = vsel %vm108, %v107, %v101
  %v113 = vmul.f32 %v112, %v33
  %v114 = vmul.f32 %v111, %v34
  %v115 = vmul.f32 %v110, %v35
  %v116 = vmul.f32 %v109, %v36
  %117 = vrot.lane.b32.xlu0 %v67, 15
  %v118 = vpop.permute.xlu0 %117
  %119 = vrot.lane.b32.xlu0 %v68, 15
  %v120 = vpop.permute.xlu0 %119
  %121 = vrot.lane.b32.xlu0 %v69, 15
  %v122 = vpop.permute.xlu0 %121
  %123 = vrot.lane.b32.xlu0 %v70, 15
  %v124 = vpop.permute.xlu0 %123
  %vm125 = vcmp.lt.s32.totalorder %v90, 15
  %v126 = vsel %vm125, %v122, %v124
  %v127 = vsel %vm125, %v120, %v122
  %v128 = vsel %vm125, %v118, %v120
  %v129 = vsel %vm125, %v124, %v118
  %v130 = vmul.f32 %v129, %v38
  %v131 = vmul.f32 %v128, %v39
  %v132 = vmul.f32 %v127, %v40
  %v133 = vmul.f32 %v126, %v41
  %134 = vrot.lane.b32.xlu0 %v67, 1
  %v135 = vpop.permute.xlu0 %134
  %136 = vrot.lane.b32.xlu0 %v68, 1
  %v137 = vpop.permute.xlu0 %136
  %138 = vrot.lane.b32.xlu0 %v69, 1
  %v139 = vpop.permute.xlu0 %138
  %140 = vrot.lane.b32.xlu0 %v70, 1
  %v141 = vpop.permute.xlu0 %140
  %vm142 = vcmp.lt.s32.totalorder %v90, 1
  %v143 = vsel %vm142, %v139, %v141
  %v144 = vsel %vm142, %v137, %v139
  %v145 = vsel %vm142, %v135, %v137
  %v146 = vsel %vm142, %v141, %v135
  %v147 = vmul.f32 %v146, %v43
  %v148 = vmul.f32 %v145, %v44
  %v149 = vmul.f32 %v144, %v45
  %v150 = vmul.f32 %v143, %v46
  %151 = vrot.lane.b32.xlu0 %v67, 127
  %v152 = vpop.permute.xlu0 %151
  %153 = vrot.lane.b32.xlu0 %v68, 127
  %v154 = vpop.permute.xlu0 %153
  %155 = vrot.lane.b32.xlu0 %v69, 127
  %v156 = vpop.permute.xlu0 %155
  %157 = vrot.lane.b32.xlu0 %v70, 127
  %v158 = vpop.permute.xlu0 %157
  %vm159 = vcmp.lt.s32.totalorder %v90, 127
  %v160 = vsel %vm159, %v156, %v158
  %v161 = vsel %vm159, %v154, %v156
  %v162 = vsel %vm159, %v152, %v154
  %v163 = vsel %vm159, %v158, %v152
  %v164 = vmul.f32 %v162, %v48
  %v165 = vmul.f32 %v161, %v49
  %v166 = vmul.f32 %v160, %v50
  %v167 = vmul.f32 %v163, %v51
  %168 = vrot.lane.b32.xlu0 %v67, 113
  %v169 = vpop.permute.xlu0 %168
  %170 = vrot.lane.b32.xlu0 %v68, 113
  %v171 = vpop.permute.xlu0 %170
  %172 = vrot.lane.b32.xlu0 %v69, 113
  %v173 = vpop.permute.xlu0 %172
  %174 = vrot.lane.b32.xlu0 %v70, 113
  %v175 = vpop.permute.xlu0 %174
  %vm176 = vcmp.lt.s32.totalorder %v90, 113
  %v177 = vsel %vm176, %v173, %v175
  %v178 = vsel %vm176, %v171, %v173
  %v179 = vsel %vm176, %v169, %v171
  %v180 = vsel %vm176, %v175, %v169
  %v181 = vmul.f32 %v179, %v53
  %v182 = vmul.f32 %v178, %v54
  %v183 = vmul.f32 %v177, %v55
  %v184 = vmul.f32 %v180, %v56
  %185 = vrot.lane.b32.xlu0 %v67, 112
  %v186 = vpop.permute.xlu0 %185
  %187 = vrot.lane.b32.xlu0 %v68, 112
  %v188 = vpop.permute.xlu0 %187
  %189 = vrot.lane.b32.xlu0 %v69, 112
  %v190 = vpop.permute.xlu0 %189
  %191 = vrot.lane.b32.xlu0 %v70, 112
  %v192 = vpop.permute.xlu0 %191
  %vm193 = vcmp.lt.s32.totalorder %v90, 112
  %v194 = vsel %vm193, %v190, %v192
  %v195 = vsel %vm193, %v188, %v190
  %v196 = vsel %vm193, %v186, %v188
  %v197 = vsel %vm193, %v192, %v186
  %v198 = vmul.f32 %v196, %v58
  %v199 = vmul.f32 %v195, %v59
  %v200 = vmul.f32 %v194, %v60
  %v201 = vmul.f32 %v197, %v61
  %202 = vrot.lane.b32.xlu0 %v67, 111
  %v203 = vpop.permute.xlu0 %202
  %204 = vrot.lane.b32.xlu0 %v68, 111
  %v205 = vpop.permute.xlu0 %204
  %206 = vrot.lane.b32.xlu0 %v69, 111
  %v207 = vpop.permute.xlu0 %206
  %208 = vrot.lane.b32.xlu0 %v70, 111
  %v209 = vpop.permute.xlu0 %208
  %vm210 = vcmp.lt.s32.totalorder %v90, 111
  %v211 = vsel %vm210, %v207, %v209
  %v212 = vsel %vm210, %v205, %v207
  %v213 = vsel %vm210, %v203, %v205
  %v214 = vsel %vm210, %v209, %v203
  %v215 = vmul.f32 %v213, %v63
  %v216 = vmul.f32 %v212, %v64
  %v217 = vmul.f32 %v211, %v65
  %v218 = vmul.f32 %v214, %v66
  %vm219 = vcmask 588800
  %v221 = vsel %vm219, %v71, 0
  %223 = vmatprep.subr.mxu0 0.0
  %224 = vmatpush1.msra.mxu0 0.0
  %225 = vmatprep.subr.mxu0 0.0
  %226 = vmatpush1.msra.mxu0 0.0
  %227 = vmatprep.subr.mxu0 0.0
  %228 = vmatpush1.msra.mxu0 0.0
  %229 = vmatprep.subr.mxu0 0.0
  %230 = vmatpush1.msra.mxu0 0.0
  %231 = vmatprep.subr.mxu0 0.0
  %232 = vmatpush1.msra.mxu0 0.0
  %233 = vmatprep.subr.mxu0 0.0
  %234 = vmatpush1.msra.mxu0 0.0
  %235 = vmatprep.subr.mxu0 0.0
  %236 = vmatpush1.msra.mxu0 0.0
  %237 = vmatprep.subr.mxu0 %v216
  %238 = vmatpush1.msra.mxu0 %v215
  %239 = vmatprep.subr.mxu0 %v199
  %240 = vmatpush1.msra.mxu0 %v198
  %241 = vmatprep.subr.mxu0 %v182
  %242 = vmatpush1.msra.mxu0 %v181
  %243 = vmatprep.subr.mxu0 %v165
  %244 = vmatpush1.msra.mxu0 %v164
  %245 = vmatprep.subr.mxu0 %v68
  %246 = vmatpush1.msra.mxu0 %v67
  %247 = vmatprep.subr.mxu0 %v148
  %248 = vmatpush1.msra.mxu0 %v147
  %249 = vmatprep.subr.mxu0 %v131
  %250 = vmatpush1.msra.mxu0 %v130
  %251 = vmatprep.subr.mxu0 %v114
  %252 = vmatpush1.msra.mxu0 %v113
  %253 = vmatprep.subr.mxu0 %v97
  %254 = vmatpush1.msra.mxu0 %v96
  %255 = vmatprep.subr.mxu0 0.0
  %256 = vmatpush2.msra.mxu0 0.0
  %257 = vmatprep.subr.mxu0 0.0
  %258 = vmatpush2.msra.mxu0 0.0
  %259 = vmatprep.subr.mxu0 0.0
  %260 = vmatpush2.msra.mxu0 0.0
  %261 = vmatprep.subr.mxu0 0.0
  %262 = vmatpush2.msra.mxu0 0.0
  %263 = vmatprep.subr.mxu0 0.0
  %264 = vmatpush2.msra.mxu0 0.0
  %265 = vmatprep.subr.mxu0 0.0
  %266 = vmatpush2.msra.mxu0 0.0
  %267 = vmatprep.subr.mxu0 0.0
  %268 = vmatpush2.msra.mxu0 0.0
  %269 = vmatprep.subr.mxu0 0.0
  %270 = vmatpush2.msra.mxu0 0.0
  %271 = vmatprep.subr.mxu0 0.0
  %272 = vmatpush2.msra.mxu0 0.0
  %273 = vmatprep.subr.mxu0 0.0
  %274 = vmatpush2.msra.mxu0 0.0
  %275 = vmatprep.subr.mxu0 0.0
  %276 = vmatpush2.msra.mxu0 0.0
  %277 = vmatprep.subr.mxu0 0.0
  %278 = vmatpush2.msra.mxu0 0.0
  %279 = vmatprep.subr.mxu0 0.0
  %280 = vmatpush2.msra.mxu0 0.0
  %281 = vmatprep.subr.mxu0 0.0
  %282 = vmatpush2.msra.mxu0 0.0
  %283 = vmatprep.subr.mxu0 0.0
  %284 = vmatpush2.msra.mxu0 0.0
  %285 = vmatprep.subr.mxu0 0.0
  %286 = vmatpush2.msra.mxu0 0.0
  %287 = vmatprep.mubr.f32.mxu0 0.0
  %288 = vmatmul.mubr.f32.gmra.mxu0 %v221
  %v289 = vpop.f32.mrf.mxu0
  %v290 = vadd.f32 0.0, %v289
  %v291 = vpop.f32.mrf.mxu0
  %v292 = vadd.f32 0.0, %v291
  %293 = vdwg.mxu0
  %294 = vmatprep.subr.mxu0 0.0
  %295 = vmatpush1.msra.mxu0 0.0
  %296 = vmatprep.subr.mxu0 0.0
  %297 = vmatpush1.msra.mxu0 0.0
  %298 = vmatprep.subr.mxu0 0.0
  %299 = vmatpush1.msra.mxu0 0.0
  %300 = vmatprep.subr.mxu0 0.0
  %301 = vmatpush1.msra.mxu0 0.0
  %302 = vmatprep.subr.mxu0 0.0
  %303 = vmatpush1.msra.mxu0 0.0
  %304 = vmatprep.subr.mxu0 0.0
  %305 = vmatpush1.msra.mxu0 0.0
  %306 = vmatprep.subr.mxu0 0.0
  %307 = vmatpush1.msra.mxu0 0.0
  %308 = vmatprep.subr.mxu0 %v218
  %309 = vmatpush1.msra.mxu0 %v217
  %310 = vmatprep.subr.mxu0 %v201
  %311 = vmatpush1.msra.mxu0 %v200
  %312 = vmatprep.subr.mxu0 %v184
  %313 = vmatpush1.msra.mxu0 %v183
  %314 = vmatprep.subr.mxu0 %v167
  %315 = vmatpush1.msra.mxu0 %v166
  %316 = vmatprep.subr.mxu0 %v70
  %317 = vmatpush1.msra.mxu0 %v69
  %318 = vmatprep.subr.mxu0 %v150
  %319 = vmatpush1.msra.mxu0 %v149
  %320 = vmatprep.subr.mxu0 %v133
  %321 = vmatpush1.msra.mxu0 %v132
  %322 = vmatprep.subr.mxu0 %v116
  %323 = vmatpush1.msra.mxu0 %v115
  %324 = vmatprep.subr.mxu0 %v99
  %325 = vmatpush1.msra.mxu0 %v98
  %326 = vmatprep.subr.mxu0 0.0
  %327 = vmatpush2.msra.mxu0 0.0
  %328 = vmatprep.subr.mxu0 0.0
  %329 = vmatpush2.msra.mxu0 0.0
  %330 = vmatprep.subr.mxu0 0.0
  %331 = vmatpush2.msra.mxu0 0.0
  %332 = vmatprep.subr.mxu0 0.0
  %333 = vmatpush2.msra.mxu0 0.0
  %334 = vmatprep.subr.mxu0 0.0
  %335 = vmatpush2.msra.mxu0 0.0
  %336 = vmatprep.subr.mxu0 0.0
  %337 = vmatpush2.msra.mxu0 0.0
  %338 = vmatprep.subr.mxu0 0.0
  %339 = vmatpush2.msra.mxu0 0.0
  %340 = vmatprep.subr.mxu0 0.0
  %341 = vmatpush2.msra.mxu0 0.0
  %342 = vmatprep.subr.mxu0 0.0
  %343 = vmatpush2.msra.mxu0 0.0
  %344 = vmatprep.subr.mxu0 0.0
  %345 = vmatpush2.msra.mxu0 0.0
  %346 = vmatprep.subr.mxu0 0.0
  %347 = vmatpush2.msra.mxu0 0.0
  %348 = vmatprep.subr.mxu0 0.0
  %349 = vmatpush2.msra.mxu0 0.0
  %350 = vmatprep.subr.mxu0 0.0
  %351 = vmatpush2.msra.mxu0 0.0
  %352 = vmatprep.subr.mxu0 0.0
  %353 = vmatpush2.msra.mxu0 0.0
  %354 = vmatprep.subr.mxu0 0.0
  %355 = vmatpush2.msra.mxu0 0.0
  %356 = vmatprep.subr.mxu0 0.0
  %357 = vmatpush2.msra.mxu0 0.0
  %358 = vmatprep.mubr.f32.mxu0 0.0
  %359 = vmatmul.mubr.f32.gmra.mxu0 %v221
  %v360 = vpop.f32.mrf.mxu0
  %v361 = vadd.f32 0.0, %v360
  %v362 = vpop.f32.mrf.mxu0
  %v363 = vadd.f32 0.0, %v362
  %364 = vdwg.mxu0
  %v365 = vadd.f32 %v290, %v292
  %366 = vadd.xlane.f32.xlu0 %v365
  %v367 = vpop.xlane.xlu0 %366
  %v368 = vmul.f32 %v290, %v290
  %v369 = vmul.f32 %v292, %v292
  %v370 = vadd.f32 %v368, %v369
  %371 = vadd.xlane.f32.xlu0 %v370
  %v372 = vpop.xlane.xlu0 %371
  %v373 = vrcp.pop 256.0
  %v374 = vmul.f32 %v367, %v373
  %v375 = vmul.f32 %v372, %v373
  %v376 = vmul.f32 %v374, %v374
  %v377 = vsub.f32 %v375, %v376
  %v378 = vadd.f32 %v377, 1e-05
  %v379 = vrsqrt.pop %v378
  %v380 = vmul.f32 %v379, %v78
  %v381 = vmul.f32 %v374, %v380
  %v382 = vsub.f32 %v80, %v381
  %384 = vset.pattern.permute.xlu0 0
  %385 = vperm.xlu0 %384, %v380
  %v386 = vpop.permute.xlu0 %385
  %v388 = vmul.f32 %v290, %v386
  %v389 = vmul.f32 %v292, %v386
  %391 = vset.pattern.permute.xlu0 0
  %392 = vperm.xlu0 %391, %v382
  %v393 = vpop.permute.xlu0 %392
  %v395 = vadd.f32 %v388, %v393
  %v396 = vadd.f32 %v389, %v393
  %v397 = vadd.f32 %v361, %v363
  %398 = vadd.xlane.f32.xlu0 %v397
  %v399 = vpop.xlane.xlu0 %398
  %v400 = vmul.f32 %v361, %v361
  %v401 = vmul.f32 %v363, %v363
  %v402 = vadd.f32 %v400, %v401
  %403 = vadd.xlane.f32.xlu0 %v402
  %v404 = vpop.xlane.xlu0 %403
  %v405 = vmul.f32 %v399, %v373
  %v406 = vmul.f32 %v404, %v373
  %v407 = vmul.f32 %v405, %v405
  %v408 = vsub.f32 %v406, %v407
  %v409 = vadd.f32 %v408, 1e-05
  %v410 = vrsqrt.pop %v409
  %v411 = vmul.f32 %v410, %v78
  %v412 = vmul.f32 %v405, %v411
  %v413 = vsub.f32 %v80, %v412
  %415 = vset.pattern.permute.xlu0 1
  %416 = vperm.xlu0 %415, %v411
  %v417 = vpop.permute.xlu0 %416
  %v419 = vmul.f32 %v361, %v417
  %v420 = vmul.f32 %v363, %v417
  %422 = vset.pattern.permute.xlu0 1
  %423 = vperm.xlu0 %422, %v413
  %v424 = vpop.permute.xlu0 %423
  %v426 = vadd.f32 %v419, %v424
  %v427 = vadd.f32 %v420, %v424
  %v428 = vxor.u32 %v395, 2147483648
  %v429 = vxor.u32 %v396, 2147483648
  %v430 = vxor.u32 %v426, 2147483648
  %v431 = vxor.u32 %v427, 2147483648
  %v432 = vmul.f32 %v428, 1.442695
  %v433 = vpow.pop %v432
  %v434 = vmul.f32 %v429, 1.442695
  %v435 = vpow.pop %v434
  %v436 = vmul.f32 %v430, 1.442695
  %v437 = vpow.pop %v436
  %v438 = vmul.f32 %v431, 1.442695
  %v439 = vpow.pop %v438
  %v440 = vadd.f32 %v433, 1.0
  %v441 = vadd.f32 %v435, 1.0
  %v442 = vadd.f32 %v437, 1.0
  %v443 = vadd.f32 %v439, 1.0
  %v444 = vrcp.pop %v440
  %v445 = vmul.f32 1.0, %v444
  %v446 = vrcp.pop %v441
  %v447 = vmul.f32 1.0, %v446
  %v448 = vrcp.pop %v442
  %v449 = vmul.f32 1.0, %v448
  %v450 = vrcp.pop %v443
  %v451 = vmul.f32 1.0, %v450
  %v452 = vmul.f32 %v395, %v445
  %v453 = vmul.f32 %v396, %v447
  %v454 = vmul.f32 %v426, %v449
  %v455 = vmul.f32 %v427, %v451
  %456 = vrot.lane.b32.xlu0 %v452, 17
  %v457 = vpop.permute.xlu0 %456
  %458 = vrot.lane.b32.xlu0 %v453, 17
  %v459 = vpop.permute.xlu0 %458
  %460 = vrot.lane.b32.xlu0 %v454, 17
  %v461 = vpop.permute.xlu0 %460
  %462 = vrot.lane.b32.xlu0 %v455, 17
  %v463 = vpop.permute.xlu0 %462
  %v464 = vsel %vm91, %v461, %v463
  %v465 = vsel %vm91, %v459, %v461
  %v466 = vsel %vm91, %v457, %v459
  %v467 = vsel %vm91, %v463, %v457
  %v468 = vmul.f32 %v467, %v28
  %v469 = vmul.f32 %v466, %v29
  %v470 = vmul.f32 %v465, %v30
  %v471 = vmul.f32 %v464, %v31
  %472 = vrot.lane.b32.xlu0 %v452, 16
  %v473 = vpop.permute.xlu0 %472
  %474 = vrot.lane.b32.xlu0 %v453, 16
  %v475 = vpop.permute.xlu0 %474
  %476 = vrot.lane.b32.xlu0 %v454, 16
  %v477 = vpop.permute.xlu0 %476
  %478 = vrot.lane.b32.xlu0 %v455, 16
  %v479 = vpop.permute.xlu0 %478
  %v480 = vsel %vm108, %v477, %v479
  %v481 = vsel %vm108, %v475, %v477
  %v482 = vsel %vm108, %v473, %v475
  %v483 = vsel %vm108, %v479, %v473
  %v484 = vmul.f32 %v483, %v33
  %v485 = vmul.f32 %v482, %v34
  %v486 = vmul.f32 %v481, %v35
  %v487 = vmul.f32 %v480, %v36
  %488 = vrot.lane.b32.xlu0 %v452, 15
  %v489 = vpop.permute.xlu0 %488
  %490 = vrot.lane.b32.xlu0 %v453, 15
  %v491 = vpop.permute.xlu0 %490
  %492 = vrot.lane.b32.xlu0 %v454, 15
  %v493 = vpop.permute.xlu0 %492
  %494 = vrot.lane.b32.xlu0 %v455, 15
  %v495 = vpop.permute.xlu0 %494
  %v496 = vsel %vm125, %v493, %v495
  %v497 = vsel %vm125, %v491, %v493
  %v498 = vsel %vm125, %v489, %v491
  %v499 = vsel %vm125, %v495, %v489
  %v500 = vmul.f32 %v499, %v38
  %v501 = vmul.f32 %v498, %v39
  %v502 = vmul.f32 %v497, %v40
  %v503 = vmul.f32 %v496, %v41
  %504 = vrot.lane.b32.xlu0 %v452, 1
  %v505 = vpop.permute.xlu0 %504
  %506 = vrot.lane.b32.xlu0 %v453, 1
  %v507 = vpop.permute.xlu0 %506
  %508 = vrot.lane.b32.xlu0 %v454, 1
  %v509 = vpop.permute.xlu0 %508
  %510 = vrot.lane.b32.xlu0 %v455, 1
  %v511 = vpop.permute.xlu0 %510
  %v512 = vsel %vm142, %v509, %v511
  %v513 = vsel %vm142, %v507, %v509
  %v514 = vsel %vm142, %v505, %v507
  %v515 = vsel %vm142, %v511, %v505
  %v516 = vmul.f32 %v515, %v43
  %v517 = vmul.f32 %v514, %v44
  %v518 = vmul.f32 %v513, %v45
  %v519 = vmul.f32 %v512, %v46
  %520 = vrot.lane.b32.xlu0 %v452, 127
  %v521 = vpop.permute.xlu0 %520
  %522 = vrot.lane.b32.xlu0 %v453, 127
  %v523 = vpop.permute.xlu0 %522
  %524 = vrot.lane.b32.xlu0 %v454, 127
  %v525 = vpop.permute.xlu0 %524
  %526 = vrot.lane.b32.xlu0 %v455, 127
  %v527 = vpop.permute.xlu0 %526
  %v528 = vsel %vm159, %v525, %v527
  %v529 = vsel %vm159, %v523, %v525
  %v530 = vsel %vm159, %v521, %v523
  %v531 = vsel %vm159, %v527, %v521
  %v532 = vmul.f32 %v530, %v48
  %v533 = vmul.f32 %v529, %v49
  %v534 = vmul.f32 %v528, %v50
  %v535 = vmul.f32 %v531, %v51
  %536 = vrot.lane.b32.xlu0 %v452, 113
  %v537 = vpop.permute.xlu0 %536
  %538 = vrot.lane.b32.xlu0 %v453, 113
  %v539 = vpop.permute.xlu0 %538
  %540 = vrot.lane.b32.xlu0 %v454, 113
  %v541 = vpop.permute.xlu0 %540
  %542 = vrot.lane.b32.xlu0 %v455, 113
  %v543 = vpop.permute.xlu0 %542
  %v544 = vsel %vm176, %v541, %v543
  %v545 = vsel %vm176, %v539, %v541
  %v546 = vsel %vm176, %v537, %v539
  %v547 = vsel %vm176, %v543, %v537
  %v548 = vmul.f32 %v546, %v53
  %v549 = vmul.f32 %v545, %v54
  %v550 = vmul.f32 %v544, %v55
  %v551 = vmul.f32 %v547, %v56
  %552 = vrot.lane.b32.xlu0 %v452, 112
  %v553 = vpop.permute.xlu0 %552
  %554 = vrot.lane.b32.xlu0 %v453, 112
  %v555 = vpop.permute.xlu0 %554
  %556 = vrot.lane.b32.xlu0 %v454, 112
  %v557 = vpop.permute.xlu0 %556
  %558 = vrot.lane.b32.xlu0 %v455, 112
  %v559 = vpop.permute.xlu0 %558
  %v560 = vsel %vm193, %v557, %v559
  %v561 = vsel %vm193, %v555, %v557
  %v562 = vsel %vm193, %v553, %v555
  %v563 = vsel %vm193, %v559, %v553
  %v564 = vmul.f32 %v562, %v58
  %v565 = vmul.f32 %v561, %v59
  %v566 = vmul.f32 %v560, %v60
  %v567 = vmul.f32 %v563, %v61
  %568 = vrot.lane.b32.xlu0 %v452, 111
  %v569 = vpop.permute.xlu0 %568
  %570 = vrot.lane.b32.xlu0 %v453, 111
  %v571 = vpop.permute.xlu0 %570
  %572 = vrot.lane.b32.xlu0 %v454, 111
  %v573 = vpop.permute.xlu0 %572
  %574 = vrot.lane.b32.xlu0 %v455, 111
  %v575 = vpop.permute.xlu0 %574
  %v576 = vsel %vm210, %v573, %v575
  %v577 = vsel %vm210, %v571, %v573
  %v578 = vsel %vm210, %v569, %v571
  %v579 = vsel %vm210, %v575, %v569
  %v580 = vmul.f32 %v578, %v63
  %v581 = vmul.f32 %v577, %v64
  %v582 = vmul.f32 %v576, %v65
  %v583 = vmul.f32 %v579, %v66
  %v585 = vsel %vm219, %v73, 0
  %587 = vmatprep.subr.mxu0 0.0
  %588 = vmatpush1.msra.mxu0 0.0
  %589 = vmatprep.subr.mxu0 0.0
  %590 = vmatpush1.msra.mxu0 0.0
  %591 = vmatprep.subr.mxu0 0.0
  %592 = vmatpush1.msra.mxu0 0.0
  %593 = vmatprep.subr.mxu0 0.0
  %594 = vmatpush1.msra.mxu0 0.0
  %595 = vmatprep.subr.mxu0 0.0
  %596 = vmatpush1.msra.mxu0 0.0
  %597 = vmatprep.subr.mxu0 0.0
  %598 = vmatpush1.msra.mxu0 0.0
  %599 = vmatprep.subr.mxu0 0.0
  %600 = vmatpush1.msra.mxu0 0.0
  %601 = vmatprep.subr.mxu0 %v581
  %602 = vmatpush1.msra.mxu0 %v580
  %603 = vmatprep.subr.mxu0 %v565
  %604 = vmatpush1.msra.mxu0 %v564
  %605 = vmatprep.subr.mxu0 %v549
  %606 = vmatpush1.msra.mxu0 %v548
  %607 = vmatprep.subr.mxu0 %v533
  %608 = vmatpush1.msra.mxu0 %v532
  %609 = vmatprep.subr.mxu0 %v453
  %610 = vmatpush1.msra.mxu0 %v452
  %611 = vmatprep.subr.mxu0 %v517
  %612 = vmatpush1.msra.mxu0 %v516
  %613 = vmatprep.subr.mxu0 %v501
  %614 = vmatpush1.msra.mxu0 %v500
  %615 = vmatprep.subr.mxu0 %v485
  %616 = vmatpush1.msra.mxu0 %v484
  %617 = vmatprep.subr.mxu0 %v469
  %618 = vmatpush1.msra.mxu0 %v468
  %619 = vmatprep.subr.mxu0 0.0
  %620 = vmatpush2.msra.mxu0 0.0
  %621 = vmatprep.subr.mxu0 0.0
  %622 = vmatpush2.msra.mxu0 0.0
  %623 = vmatprep.subr.mxu0 0.0
  %624 = vmatpush2.msra.mxu0 0.0
  %625 = vmatprep.subr.mxu0 0.0
  %626 = vmatpush2.msra.mxu0 0.0
  %627 = vmatprep.subr.mxu0 0.0
  %628 = vmatpush2.msra.mxu0 0.0
  %629 = vmatprep.subr.mxu0 0.0
  %630 = vmatpush2.msra.mxu0 0.0
  %631 = vmatprep.subr.mxu0 0.0
  %632 = vmatpush2.msra.mxu0 0.0
  %633 = vmatprep.subr.mxu0 0.0
  %634 = vmatpush2.msra.mxu0 0.0
  %635 = vmatprep.subr.mxu0 0.0
  %636 = vmatpush2.msra.mxu0 0.0
  %637 = vmatprep.subr.mxu0 0.0
  %638 = vmatpush2.msra.mxu0 0.0
  %639 = vmatprep.subr.mxu0 0.0
  %640 = vmatpush2.msra.mxu0 0.0
  %641 = vmatprep.subr.mxu0 0.0
  %642 = vmatpush2.msra.mxu0 0.0
  %643 = vmatprep.subr.mxu0 0.0
  %644 = vmatpush2.msra.mxu0 0.0
  %645 = vmatprep.subr.mxu0 0.0
  %646 = vmatpush2.msra.mxu0 0.0
  %647 = vmatprep.subr.mxu0 0.0
  %648 = vmatpush2.msra.mxu0 0.0
  %649 = vmatprep.subr.mxu0 0.0
  %650 = vmatpush2.msra.mxu0 0.0
  %651 = vmatprep.mubr.f32.mxu0 0.0
  %652 = vmatmul.mubr.f32.gmra.mxu0 %v585
  %v653 = vpop.f32.mrf.mxu0
  %v654 = vadd.f32 0.0, %v653
  %v655 = vpop.f32.mrf.mxu0
  %v656 = vadd.f32 0.0, %v655
  %657 = vdwg.mxu0
  %658 = vmatprep.subr.mxu0 0.0
  %659 = vmatpush1.msra.mxu0 0.0
  %660 = vmatprep.subr.mxu0 0.0
  %661 = vmatpush1.msra.mxu0 0.0
  %662 = vmatprep.subr.mxu0 0.0
  %663 = vmatpush1.msra.mxu0 0.0
  %664 = vmatprep.subr.mxu0 0.0
  %665 = vmatpush1.msra.mxu0 0.0
  %666 = vmatprep.subr.mxu0 0.0
  %667 = vmatpush1.msra.mxu0 0.0
  %668 = vmatprep.subr.mxu0 0.0
  %669 = vmatpush1.msra.mxu0 0.0
  %670 = vmatprep.subr.mxu0 0.0
  %671 = vmatpush1.msra.mxu0 0.0
  %672 = vmatprep.subr.mxu0 %v583
  %673 = vmatpush1.msra.mxu0 %v582
  %674 = vmatprep.subr.mxu0 %v567
  %675 = vmatpush1.msra.mxu0 %v566
  %676 = vmatprep.subr.mxu0 %v551
  %677 = vmatpush1.msra.mxu0 %v550
  %678 = vmatprep.subr.mxu0 %v535
  %679 = vmatpush1.msra.mxu0 %v534
  %680 = vmatprep.subr.mxu0 %v455
  %681 = vmatpush1.msra.mxu0 %v454
  %682 = vmatprep.subr.mxu0 %v519
  %683 = vmatpush1.msra.mxu0 %v518
  %684 = vmatprep.subr.mxu0 %v503
  %685 = vmatpush1.msra.mxu0 %v502
  %686 = vmatprep.subr.mxu0 %v487
  %687 = vmatpush1.msra.mxu0 %v486
  %688 = vmatprep.subr.mxu0 %v471
  %689 = vmatpush1.msra.mxu0 %v470
  %690 = vmatprep.subr.mxu0 0.0
  %691 = vmatpush2.msra.mxu0 0.0
  %692 = vmatprep.subr.mxu0 0.0
  %693 = vmatpush2.msra.mxu0 0.0
  %694 = vmatprep.subr.mxu0 0.0
  %695 = vmatpush2.msra.mxu0 0.0
  %696 = vmatprep.subr.mxu0 0.0
  %697 = vmatpush2.msra.mxu0 0.0
  %698 = vmatprep.subr.mxu0 0.0
  %699 = vmatpush2.msra.mxu0 0.0
  %700 = vmatprep.subr.mxu0 0.0
  %701 = vmatpush2.msra.mxu0 0.0
  %702 = vmatprep.subr.mxu0 0.0
  %703 = vmatpush2.msra.mxu0 0.0
  %704 = vmatprep.subr.mxu0 0.0
  %705 = vmatpush2.msra.mxu0 0.0
  %706 = vmatprep.subr.mxu0 0.0
  %707 = vmatpush2.msra.mxu0 0.0
  %708 = vmatprep.subr.mxu0 0.0
  %709 = vmatpush2.msra.mxu0 0.0
  %710 = vmatprep.subr.mxu0 0.0
  %711 = vmatpush2.msra.mxu0 0.0
  %712 = vmatprep.subr.mxu0 0.0
  %713 = vmatpush2.msra.mxu0 0.0
  %714 = vmatprep.subr.mxu0 0.0
  %715 = vmatpush2.msra.mxu0 0.0
  %716 = vmatprep.subr.mxu0 0.0
  %717 = vmatpush2.msra.mxu0 0.0
  %718 = vmatprep.subr.mxu0 0.0
  %719 = vmatpush2.msra.mxu0 0.0
  %720 = vmatprep.subr.mxu0 0.0
  %721 = vmatpush2.msra.mxu0 0.0
  %722 = vmatprep.mubr.f32.mxu0 0.0
  %723 = vmatmul.mubr.f32.gmra.mxu0 %v585
  %v724 = vpop.f32.mrf.mxu0
  %v725 = vadd.f32 0.0, %v724
  %v726 = vpop.f32.mrf.mxu0
  %v727 = vadd.f32 0.0, %v726
  %728 = vdwg.mxu0
  %v729 = vadd.f32 %v654, %v656
  %730 = vadd.xlane.f32.xlu0 %v729
  %v731 = vpop.xlane.xlu0 %730
  %v732 = vmul.f32 %v654, %v654
  %v733 = vmul.f32 %v656, %v656
  %v734 = vadd.f32 %v732, %v733
  %735 = vadd.xlane.f32.xlu0 %v734
  %v736 = vpop.xlane.xlu0 %735
  %v737 = vmul.f32 %v731, %v373
  %v738 = vmul.f32 %v736, %v373
  %v739 = vmul.f32 %v737, %v737
  %v740 = vsub.f32 %v738, %v739
  %v741 = vadd.f32 %v740, 1e-05
  %v742 = vrsqrt.pop %v741
  %v743 = vmul.f32 %v742, %v75
  %v744 = vmul.f32 %v737, %v743
  %v745 = vsub.f32 %v77, %v744
  %747 = vset.pattern.permute.xlu0 0
  %748 = vperm.xlu0 %747, %v743
  %v749 = vpop.permute.xlu0 %748
  %v751 = vmul.f32 %v654, %v749
  %v752 = vmul.f32 %v656, %v749
  %754 = vset.pattern.permute.xlu0 0
  %755 = vperm.xlu0 %754, %v745
  %v756 = vpop.permute.xlu0 %755
  %v758 = vadd.f32 %v751, %v756
  %v759 = vadd.f32 %v752, %v756
  %v760 = vadd.f32 %v725, %v727
  %761 = vadd.xlane.f32.xlu0 %v760
  %v762 = vpop.xlane.xlu0 %761
  %v763 = vmul.f32 %v725, %v725
  %v764 = vmul.f32 %v727, %v727
  %v765 = vadd.f32 %v763, %v764
  %766 = vadd.xlane.f32.xlu0 %v765
  %v767 = vpop.xlane.xlu0 %766
  %v768 = vmul.f32 %v762, %v373
  %v769 = vmul.f32 %v767, %v373
  %v770 = vmul.f32 %v768, %v768
  %v771 = vsub.f32 %v769, %v770
  %v772 = vadd.f32 %v771, 1e-05
  %v773 = vrsqrt.pop %v772
  %v774 = vmul.f32 %v773, %v75
  %v775 = vmul.f32 %v768, %v774
  %v776 = vsub.f32 %v77, %v775
  %778 = vset.pattern.permute.xlu0 0
  %779 = vperm.xlu0 %778, %v774
  %v780 = vpop.permute.xlu0 %779
  %v782 = vmul.f32 %v725, %v780
  %v783 = vmul.f32 %v727, %v780
  %785 = vset.pattern.permute.xlu0 0
  %786 = vperm.xlu0 %785, %v776
  %v787 = vpop.permute.xlu0 %786
  %v789 = vadd.f32 %v782, %v787
  %v790 = vadd.f32 %v783, %v787
  %v791 = vxor.u32 %v758, 2147483648
  %v792 = vxor.u32 %v759, 2147483648
  %v793 = vxor.u32 %v789, 2147483648
  %v794 = vxor.u32 %v790, 2147483648
  %v795 = vmul.f32 %v791, 1.442695
  %v796 = vpow.pop %v795
  %v797 = vmul.f32 %v792, 1.442695
  %v798 = vpow.pop %v797
  %v799 = vmul.f32 %v793, 1.442695
  %v800 = vpow.pop %v799
  %v801 = vmul.f32 %v794, 1.442695
  %v802 = vpow.pop %v801
  %v803 = vadd.f32 %v796, 1.0
  %v804 = vadd.f32 %v798, 1.0
  %v805 = vadd.f32 %v800, 1.0
  %v806 = vadd.f32 %v802, 1.0
  %v807 = vrcp.pop %v803
  %v808 = vmul.f32 1.0, %v807
  %v809 = vrcp.pop %v804
  %v810 = vmul.f32 1.0, %v809
  %v811 = vrcp.pop %v805
  %v812 = vmul.f32 1.0, %v811
  %v813 = vrcp.pop %v806
  %v814 = vmul.f32 1.0, %v813
  %v815 = vmul.f32 %v758, %v808
  %v816 = vmul.f32 %v759, %v810
  %v817 = vmul.f32 %v789, %v812
  %v818 = vmul.f32 %v790, %v814
  %v819 = vadd.f32 %v67, %v815
  %v820 = vadd.f32 %v68, %v816
  %v821 = vadd.f32 %v69, %v817
  %v822 = vadd.f32 %v70, %v818
  %s823 = scalar_lea.vmem %s4, 16
  %v824 = vld [vmem:[%s823] sm:$0xff]
  %s825 = scalar_lea.vmem %s4, 24
  %v826 = vld [vmem:[%s825] sm:$0xff]
  %s827 = scalar_lea.vmem %s3, 48
  %v828 = vld [vmem:[%s827] sm:$0xff]
  %s829 = scalar_lea.vmem %s3, 56
  %v830 = vld [vmem:[%s829] sm:$0xff]
  %s831 = scalar_lea.vmem %s2, 16
  %v832 = vld [vmem:[%s831] sm:$0xff]
  %s833 = scalar_lea.vmem %s2, 24
  %v834 = vld [vmem:[%s833] sm:$0xff]
  %835 = vrot.lane.b32.xlu0 %v819, 17
  %v836 = vpop.permute.xlu0 %835
  %837 = vrot.lane.b32.xlu0 %v820, 17
  %v838 = vpop.permute.xlu0 %837
  %839 = vrot.lane.b32.xlu0 %v821, 17
  %v840 = vpop.permute.xlu0 %839
  %841 = vrot.lane.b32.xlu0 %v822, 17
  %v842 = vpop.permute.xlu0 %841
  %v843 = vsel %vm91, %v840, %v842
  %v844 = vsel %vm91, %v838, %v840
  %v845 = vsel %vm91, %v836, %v838
  %v846 = vsel %vm91, %v842, %v836
  %v847 = vmul.f32 %v846, %v28
  %v848 = vmul.f32 %v845, %v29
  %v849 = vmul.f32 %v844, %v30
  %v850 = vmul.f32 %v843, %v31
  %851 = vrot.lane.b32.xlu0 %v819, 16
  %v852 = vpop.permute.xlu0 %851
  %853 = vrot.lane.b32.xlu0 %v820, 16
  %v854 = vpop.permute.xlu0 %853
  %855 = vrot.lane.b32.xlu0 %v821, 16
  %v856 = vpop.permute.xlu0 %855
  %857 = vrot.lane.b32.xlu0 %v822, 16
  %v858 = vpop.permute.xlu0 %857
  %v859 = vsel %vm108, %v856, %v858
  %v860 = vsel %vm108, %v854, %v856
  %v861 = vsel %vm108, %v852, %v854
  %v862 = vsel %vm108, %v858, %v852
  %v863 = vmul.f32 %v862, %v33
  %v864 = vmul.f32 %v861, %v34
  %v865 = vmul.f32 %v860, %v35
  %v866 = vmul.f32 %v859, %v36
  %867 = vrot.lane.b32.xlu0 %v819, 15
  %v868 = vpop.permute.xlu0 %867
  %869 = vrot.lane.b32.xlu0 %v820, 15
  %v870 = vpop.permute.xlu0 %869
  %871 = vrot.lane.b32.xlu0 %v821, 15
  %v872 = vpop.permute.xlu0 %871
  %873 = vrot.lane.b32.xlu0 %v822, 15
  %v874 = vpop.permute.xlu0 %873
  %v875 = vsel %vm125, %v872, %v874
  %v876 = vsel %vm125, %v870, %v872
  %v877 = vsel %vm125, %v868, %v870
  %v878 = vsel %vm125, %v874, %v868
  %v879 = vmul.f32 %v878, %v38
  %v880 = vmul.f32 %v877, %v39
  %v881 = vmul.f32 %v876, %v40
  %v882 = vmul.f32 %v875, %v41
  %883 = vrot.lane.b32.xlu0 %v819, 1
  %v884 = vpop.permute.xlu0 %883
  %885 = vrot.lane.b32.xlu0 %v820, 1
  %v886 = vpop.permute.xlu0 %885
  %887 = vrot.lane.b32.xlu0 %v821, 1
  %v888 = vpop.permute.xlu0 %887
  %889 = vrot.lane.b32.xlu0 %v822, 1
  %v890 = vpop.permute.xlu0 %889
  %v891 = vsel %vm142, %v888, %v890
  %v892 = vsel %vm142, %v886, %v888
  %v893 = vsel %vm142, %v884, %v886
  %v894 = vsel %vm142, %v890, %v884
  %v895 = vmul.f32 %v894, %v43
  %v896 = vmul.f32 %v893, %v44
  %v897 = vmul.f32 %v892, %v45
  %v898 = vmul.f32 %v891, %v46
  %899 = vrot.lane.b32.xlu0 %v819, 127
  %v900 = vpop.permute.xlu0 %899
  %901 = vrot.lane.b32.xlu0 %v820, 127
  %v902 = vpop.permute.xlu0 %901
  %903 = vrot.lane.b32.xlu0 %v821, 127
  %v904 = vpop.permute.xlu0 %903
  %905 = vrot.lane.b32.xlu0 %v822, 127
  %v906 = vpop.permute.xlu0 %905
  %v907 = vsel %vm159, %v904, %v906
  %v908 = vsel %vm159, %v902, %v904
  %v909 = vsel %vm159, %v900, %v902
  %v910 = vsel %vm159, %v906, %v900
  %v911 = vmul.f32 %v909, %v48
  %v912 = vmul.f32 %v908, %v49
  %v913 = vmul.f32 %v907, %v50
  %v914 = vmul.f32 %v910, %v51
  %915 = vrot.lane.b32.xlu0 %v819, 113
  %v916 = vpop.permute.xlu0 %915
  %917 = vrot.lane.b32.xlu0 %v820, 113
  %v918 = vpop.permute.xlu0 %917
  %919 = vrot.lane.b32.xlu0 %v821, 113
  %v920 = vpop.permute.xlu0 %919
  %921 = vrot.lane.b32.xlu0 %v822, 113
  %v922 = vpop.permute.xlu0 %921
  %v923 = vsel %vm176, %v920, %v922
  %v924 = vsel %vm176, %v918, %v920
  %v925 = vsel %vm176, %v916, %v918
  %v926 = vsel %vm176, %v922, %v916
  %v927 = vmul.f32 %v925, %v53
  %v928 = vmul.f32 %v924, %v54
  %v929 = vmul.f32 %v923, %v55
  %v930 = vmul.f32 %v926, %v56
  %931 = vrot.lane.b32.xlu0 %v819, 112
  %v932 = vpop.permute.xlu0 %931
  %933 = vrot.lane.b32.xlu0 %v820, 112
  %v934 = vpop.permute.xlu0 %933
  %935 = vrot.lane.b32.xlu0 %v821, 112
  %v936 = vpop.permute.xlu0 %935
  %937 = vrot.lane.b32.xlu0 %v822, 112
  %v938 = vpop.permute.xlu0 %937
  %v939 = vsel %vm193, %v936, %v938
  %v940 = vsel %vm193, %v934, %v936
  %v941 = vsel %vm193, %v932, %v934
  %v942 = vsel %vm193, %v938, %v932
  %v943 = vmul.f32 %v941, %v58
  %v944 = vmul.f32 %v940, %v59
  %v945 = vmul.f32 %v939, %v60
  %v946 = vmul.f32 %v942, %v61
  %947 = vrot.lane.b32.xlu0 %v819, 111
  %v948 = vpop.permute.xlu0 %947
  %949 = vrot.lane.b32.xlu0 %v820, 111
  %v950 = vpop.permute.xlu0 %949
  %951 = vrot.lane.b32.xlu0 %v821, 111
  %v952 = vpop.permute.xlu0 %951
  %953 = vrot.lane.b32.xlu0 %v822, 111
  %v954 = vpop.permute.xlu0 %953
  %v955 = vsel %vm210, %v952, %v954
  %v956 = vsel %vm210, %v950, %v952
  %v957 = vsel %vm210, %v948, %v950
  %v958 = vsel %vm210, %v954, %v948
  %v959 = vmul.f32 %v957, %v63
  %v960 = vmul.f32 %v956, %v64
  %v961 = vmul.f32 %v955, %v65
  %v962 = vmul.f32 %v958, %v66
  %v964 = vsel %vm219, %v824, 0
  %966 = vmatprep.subr.mxu0 0.0
  %967 = vmatpush1.msra.mxu0 0.0
  %968 = vmatprep.subr.mxu0 0.0
  %969 = vmatpush1.msra.mxu0 0.0
  %970 = vmatprep.subr.mxu0 0.0
  %971 = vmatpush1.msra.mxu0 0.0
  %972 = vmatprep.subr.mxu0 0.0
  %973 = vmatpush1.msra.mxu0 0.0
  %974 = vmatprep.subr.mxu0 0.0
  %975 = vmatpush1.msra.mxu0 0.0
  %976 = vmatprep.subr.mxu0 0.0
  %977 = vmatpush1.msra.mxu0 0.0
  %978 = vmatprep.subr.mxu0 0.0
  %979 = vmatpush1.msra.mxu0 0.0
  %980 = vmatprep.subr.mxu0 %v960
  %981 = vmatpush1.msra.mxu0 %v959
  %982 = vmatprep.subr.mxu0 %v944
  %983 = vmatpush1.msra.mxu0 %v943
  %984 = vmatprep.subr.mxu0 %v928
  %985 = vmatpush1.msra.mxu0 %v927
  %986 = vmatprep.subr.mxu0 %v912
  %987 = vmatpush1.msra.mxu0 %v911
  %988 = vmatprep.subr.mxu0 %v820
  %989 = vmatpush1.msra.mxu0 %v819
  %990 = vmatprep.subr.mxu0 %v896
  %991 = vmatpush1.msra.mxu0 %v895
  %992 = vmatprep.subr.mxu0 %v880
  %993 = vmatpush1.msra.mxu0 %v879
  %994 = vmatprep.subr.mxu0 %v864
  %995 = vmatpush1.msra.mxu0 %v863
  %996 = vmatprep.subr.mxu0 %v848
  %997 = vmatpush1.msra.mxu0 %v847
  %998 = vmatprep.subr.mxu0 0.0
  %999 = vmatpush2.msra.mxu0 0.0
  %1000 = vmatprep.subr.mxu0 0.0
  %1001 = vmatpush2.msra.mxu0 0.0
  %1002 = vmatprep.subr.mxu0 0.0
  %1003 = vmatpush2.msra.mxu0 0.0
  %1004 = vmatprep.subr.mxu0 0.0
  %1005 = vmatpush2.msra.mxu0 0.0
  %1006 = vmatprep.subr.mxu0 0.0
  %1007 = vmatpush2.msra.mxu0 0.0
  %1008 = vmatprep.subr.mxu0 0.0
  %1009 = vmatpush2.msra.mxu0 0.0
  %1010 = vmatprep.subr.mxu0 0.0
  %1011 = vmatpush2.msra.mxu0 0.0
  %1012 = vmatprep.subr.mxu0 0.0
  %1013 = vmatpush2.msra.mxu0 0.0
  %1014 = vmatprep.subr.mxu0 0.0
  %1015 = vmatpush2.msra.mxu0 0.0
  %1016 = vmatprep.subr.mxu0 0.0
  %1017 = vmatpush2.msra.mxu0 0.0
  %1018 = vmatprep.subr.mxu0 0.0
  %1019 = vmatpush2.msra.mxu0 0.0
  %1020 = vmatprep.subr.mxu0 0.0
  %1021 = vmatpush2.msra.mxu0 0.0
  %1022 = vmatprep.subr.mxu0 0.0
  %1023 = vmatpush2.msra.mxu0 0.0
  %1024 = vmatprep.subr.mxu0 0.0
  %1025 = vmatpush2.msra.mxu0 0.0
  %1026 = vmatprep.subr.mxu0 0.0
  %1027 = vmatpush2.msra.mxu0 0.0
  %1028 = vmatprep.subr.mxu0 0.0
  %1029 = vmatpush2.msra.mxu0 0.0
  %1030 = vmatprep.mubr.f32.mxu0 0.0
  %1031 = vmatmul.mubr.f32.gmra.mxu0 %v964
  %v1032 = vpop.f32.mrf.mxu0
  %v1033 = vadd.f32 0.0, %v1032
  %v1034 = vpop.f32.mrf.mxu0
  %v1035 = vadd.f32 0.0, %v1034
  %1036 = vdwg.mxu0
  %1037 = vmatprep.subr.mxu0 0.0
  %1038 = vmatpush1.msra.mxu0 0.0
  %1039 = vmatprep.subr.mxu0 0.0
  %1040 = vmatpush1.msra.mxu0 0.0
  %1041 = vmatprep.subr.mxu0 0.0
  %1042 = vmatpush1.msra.mxu0 0.0
  %1043 = vmatprep.subr.mxu0 0.0
  %1044 = vmatpush1.msra.mxu0 0.0
  %1045 = vmatprep.subr.mxu0 0.0
  %1046 = vmatpush1.msra.mxu0 0.0
  %1047 = vmatprep.subr.mxu0 0.0
  %1048 = vmatpush1.msra.mxu0 0.0
  %1049 = vmatprep.subr.mxu0 0.0
  %1050 = vmatpush1.msra.mxu0 0.0
  %1051 = vmatprep.subr.mxu0 %v962
  %1052 = vmatpush1.msra.mxu0 %v961
  %1053 = vmatprep.subr.mxu0 %v946
  %1054 = vmatpush1.msra.mxu0 %v945
  %1055 = vmatprep.subr.mxu0 %v930
  %1056 = vmatpush1.msra.mxu0 %v929
  %1057 = vmatprep.subr.mxu0 %v914
  %1058 = vmatpush1.msra.mxu0 %v913
  %1059 = vmatprep.subr.mxu0 %v822
  %1060 = vmatpush1.msra.mxu0 %v821
  %1061 = vmatprep.subr.mxu0 %v898
  %1062 = vmatpush1.msra.mxu0 %v897
  %1063 = vmatprep.subr.mxu0 %v882
  %1064 = vmatpush1.msra.mxu0 %v881
  %1065 = vmatprep.subr.mxu0 %v866
  %1066 = vmatpush1.msra.mxu0 %v865
  %1067 = vmatprep.subr.mxu0 %v850
  %1068 = vmatpush1.msra.mxu0 %v849
  %1069 = vmatprep.subr.mxu0 0.0
  %1070 = vmatpush2.msra.mxu0 0.0
  %1071 = vmatprep.subr.mxu0 0.0
  %1072 = vmatpush2.msra.mxu0 0.0
  %1073 = vmatprep.subr.mxu0 0.0
  %1074 = vmatpush2.msra.mxu0 0.0
  %1075 = vmatprep.subr.mxu0 0.0
  %1076 = vmatpush2.msra.mxu0 0.0
  %1077 = vmatprep.subr.mxu0 0.0
  %1078 = vmatpush2.msra.mxu0 0.0
  %1079 = vmatprep.subr.mxu0 0.0
  %1080 = vmatpush2.msra.mxu0 0.0
  %1081 = vmatprep.subr.mxu0 0.0
  %1082 = vmatpush2.msra.mxu0 0.0
  %1083 = vmatprep.subr.mxu0 0.0
  %1084 = vmatpush2.msra.mxu0 0.0
  %1085 = vmatprep.subr.mxu0 0.0
  %1086 = vmatpush2.msra.mxu0 0.0
  %1087 = vmatprep.subr.mxu0 0.0
  %1088 = vmatpush2.msra.mxu0 0.0
  %1089 = vmatprep.subr.mxu0 0.0
  %1090 = vmatpush2.msra.mxu0 0.0
  %1091 = vmatprep.subr.mxu0 0.0
  %1092 = vmatpush2.msra.mxu0 0.0
  %1093 = vmatprep.subr.mxu0 0.0
  %1094 = vmatpush2.msra.mxu0 0.0
  %1095 = vmatprep.subr.mxu0 0.0
  %1096 = vmatpush2.msra.mxu0 0.0
  %1097 = vmatprep.subr.mxu0 0.0
  %1098 = vmatpush2.msra.mxu0 0.0
  %1099 = vmatprep.subr.mxu0 0.0
  %1100 = vmatpush2.msra.mxu0 0.0
  %1101 = vmatprep.mubr.f32.mxu0 0.0
  %1102 = vmatmul.mubr.f32.gmra.mxu0 %v964
  %v1103 = vpop.f32.mrf.mxu0
  %v1104 = vadd.f32 0.0, %v1103
  %v1105 = vpop.f32.mrf.mxu0
  %v1106 = vadd.f32 0.0, %v1105
  %1107 = vdwg.mxu0
  %v1108 = vadd.f32 %v1033, %v1035
  %1109 = vadd.xlane.f32.xlu0 %v1108
  %v1110 = vpop.xlane.xlu0 %1109
  %v1111 = vmul.f32 %v1033, %v1033
  %v1112 = vmul.f32 %v1035, %v1035
  %v1113 = vadd.f32 %v1111, %v1112
  %1114 = vadd.xlane.f32.xlu0 %v1113
  %v1115 = vpop.xlane.xlu0 %1114
  %v1116 = vmul.f32 %v1110, %v373
  %v1117 = vmul.f32 %v1115, %v373
  %v1118 = vmul.f32 %v1116, %v1116
  %v1119 = vsub.f32 %v1117, %v1118
  %v1120 = vadd.f32 %v1119, 1e-05
  %v1121 = vrsqrt.pop %v1120
  %v1122 = vmul.f32 %v1121, %v832
  %v1123 = vmul.f32 %v1116, %v1122
  %v1124 = vsub.f32 %v834, %v1123
  %1126 = vset.pattern.permute.xlu0 0
  %1127 = vperm.xlu0 %1126, %v1122
  %v1128 = vpop.permute.xlu0 %1127
  %v1130 = vmul.f32 %v1033, %v1128
  %v1131 = vmul.f32 %v1035, %v1128
  %1133 = vset.pattern.permute.xlu0 0
  %1134 = vperm.xlu0 %1133, %v1124
  %v1135 = vpop.permute.xlu0 %1134
  %v1137 = vadd.f32 %v1130, %v1135
  %v1138 = vadd.f32 %v1131, %v1135
  %v1139 = vadd.f32 %v1104, %v1106
  %1140 = vadd.xlane.f32.xlu0 %v1139
  %v1141 = vpop.xlane.xlu0 %1140
  %v1142 = vmul.f32 %v1104, %v1104
  %v1143 = vmul.f32 %v1106, %v1106
  %v1144 = vadd.f32 %v1142, %v1143
  %1145 = vadd.xlane.f32.xlu0 %v1144
  %v1146 = vpop.xlane.xlu0 %1145
  %v1147 = vmul.f32 %v1141, %v373
  %v1148 = vmul.f32 %v1146, %v373
  %v1149 = vmul.f32 %v1147, %v1147
  %v1150 = vsub.f32 %v1148, %v1149
  %v1151 = vadd.f32 %v1150, 1e-05
  %v1152 = vrsqrt.pop %v1151
  %v1153 = vmul.f32 %v1152, %v832
  %v1154 = vmul.f32 %v1147, %v1153
  %v1155 = vsub.f32 %v834, %v1154
  %1157 = vset.pattern.permute.xlu0 1
  %1158 = vperm.xlu0 %1157, %v1153
  %v1159 = vpop.permute.xlu0 %1158
  %v1161 = vmul.f32 %v1104, %v1159
  %v1162 = vmul.f32 %v1106, %v1159
  %1164 = vset.pattern.permute.xlu0 1
  %1165 = vperm.xlu0 %1164, %v1155
  %v1166 = vpop.permute.xlu0 %1165
  %v1168 = vadd.f32 %v1161, %v1166
  %v1169 = vadd.f32 %v1162, %v1166
  %v1170 = vxor.u32 %v1137, 2147483648
  %v1171 = vxor.u32 %v1138, 2147483648
  %v1172 = vxor.u32 %v1168, 2147483648
  %v1173 = vxor.u32 %v1169, 2147483648
  %v1174 = vmul.f32 %v1170, 1.442695
  %v1175 = vpow.pop %v1174
  %v1176 = vmul.f32 %v1171, 1.442695
  %v1177 = vpow.pop %v1176
  %v1178 = vmul.f32 %v1172, 1.442695
  %v1179 = vpow.pop %v1178
  %v1180 = vmul.f32 %v1173, 1.442695
  %v1181 = vpow.pop %v1180
  %v1182 = vadd.f32 %v1175, 1.0
  %v1183 = vadd.f32 %v1177, 1.0
  %v1184 = vadd.f32 %v1179, 1.0
  %v1185 = vadd.f32 %v1181, 1.0
  %v1186 = vrcp.pop %v1182
  %v1187 = vmul.f32 1.0, %v1186
  %v1188 = vrcp.pop %v1183
  %v1189 = vmul.f32 1.0, %v1188
  %v1190 = vrcp.pop %v1184
  %v1191 = vmul.f32 1.0, %v1190
  %v1192 = vrcp.pop %v1185
  %v1193 = vmul.f32 1.0, %v1192
  %v1194 = vmul.f32 %v1137, %v1187
  %v1195 = vmul.f32 %v1138, %v1189
  %v1196 = vmul.f32 %v1168, %v1191
  %v1197 = vmul.f32 %v1169, %v1193
  %1198 = vrot.lane.b32.xlu0 %v1194, 17
  %v1199 = vpop.permute.xlu0 %1198
  %1200 = vrot.lane.b32.xlu0 %v1195, 17
  %v1201 = vpop.permute.xlu0 %1200
  %1202 = vrot.lane.b32.xlu0 %v1196, 17
  %v1203 = vpop.permute.xlu0 %1202
  %1204 = vrot.lane.b32.xlu0 %v1197, 17
  %v1205 = vpop.permute.xlu0 %1204
  %v1206 = vsel %vm91, %v1203, %v1205
  %v1207 = vsel %vm91, %v1201, %v1203
  %v1208 = vsel %vm91, %v1199, %v1201
  %v1209 = vsel %vm91, %v1205, %v1199
  %v1210 = vmul.f32 %v1209, %v28
  %v1211 = vmul.f32 %v1208, %v29
  %v1212 = vmul.f32 %v1207, %v30
  %v1213 = vmul.f32 %v1206, %v31
  %1214 = vrot.lane.b32.xlu0 %v1194, 16
  %v1215 = vpop.permute.xlu0 %1214
  %1216 = vrot.lane.b32.xlu0 %v1195, 16
  %v1217 = vpop.permute.xlu0 %1216
  %1218 = vrot.lane.b32.xlu0 %v1196, 16
  %v1219 = vpop.permute.xlu0 %1218
  %1220 = vrot.lane.b32.xlu0 %v1197, 16
  %v1221 = vpop.permute.xlu0 %1220
  %v1222 = vsel %vm108, %v1219, %v1221
  %v1223 = vsel %vm108, %v1217, %v1219
  %v1224 = vsel %vm108, %v1215, %v1217
  %v1225 = vsel %vm108, %v1221, %v1215
  %v1226 = vmul.f32 %v1225, %v33
  %v1227 = vmul.f32 %v1224, %v34
  %v1228 = vmul.f32 %v1223, %v35
  %v1229 = vmul.f32 %v1222, %v36
  %1230 = vrot.lane.b32.xlu0 %v1194, 15
  %v1231 = vpop.permute.xlu0 %1230
  %1232 = vrot.lane.b32.xlu0 %v1195, 15
  %v1233 = vpop.permute.xlu0 %1232
  %1234 = vrot.lane.b32.xlu0 %v1196, 15
  %v1235 = vpop.permute.xlu0 %1234
  %1236 = vrot.lane.b32.xlu0 %v1197, 15
  %v1237 = vpop.permute.xlu0 %1236
  %v1238 = vsel %vm125, %v1235, %v1237
  %v1239 = vsel %vm125, %v1233, %v1235
  %v1240 = vsel %vm125, %v1231, %v1233
  %v1241 = vsel %vm125, %v1237, %v1231
  %v1242 = vmul.f32 %v1241, %v38
  %v1243 = vmul.f32 %v1240, %v39
  %v1244 = vmul.f32 %v1239, %v40
  %v1245 = vmul.f32 %v1238, %v41
  %1246 = vrot.lane.b32.xlu0 %v1194, 1
  %v1247 = vpop.permute.xlu0 %1246
  %1248 = vrot.lane.b32.xlu0 %v1195, 1
  %v1249 = vpop.permute.xlu0 %1248
  %1250 = vrot.lane.b32.xlu0 %v1196, 1
  %v1251 = vpop.permute.xlu0 %1250
  %1252 = vrot.lane.b32.xlu0 %v1197, 1
  %v1253 = vpop.permute.xlu0 %1252
  %v1254 = vsel %vm142, %v1251, %v1253
  %v1255 = vsel %vm142, %v1249, %v1251
  %v1256 = vsel %vm142, %v1247, %v1249
  %v1257 = vsel %vm142, %v1253, %v1247
  %v1258 = vmul.f32 %v1257, %v43
  %v1259 = vmul.f32 %v1256, %v44
  %v1260 = vmul.f32 %v1255, %v45
  %v1261 = vmul.f32 %v1254, %v46
  %1262 = vrot.lane.b32.xlu0 %v1194, 127
  %v1263 = vpop.permute.xlu0 %1262
  %1264 = vrot.lane.b32.xlu0 %v1195, 127
  %v1265 = vpop.permute.xlu0 %1264
  %1266 = vrot.lane.b32.xlu0 %v1196, 127
  %v1267 = vpop.permute.xlu0 %1266
  %1268 = vrot.lane.b32.xlu0 %v1197, 127
  %v1269 = vpop.permute.xlu0 %1268
  %v1270 = vsel %vm159, %v1267, %v1269
  %v1271 = vsel %vm159, %v1265, %v1267
  %v1272 = vsel %vm159, %v1263, %v1265
  %v1273 = vsel %vm159, %v1269, %v1263
  %v1274 = vmul.f32 %v1272, %v48
  %v1275 = vmul.f32 %v1271, %v49
  %v1276 = vmul.f32 %v1270, %v50
  %v1277 = vmul.f32 %v1273, %v51
  %1278 = vrot.lane.b32.xlu0 %v1194, 113
  %v1279 = vpop.permute.xlu0 %1278
  %1280 = vrot.lane.b32.xlu0 %v1195, 113
  %v1281 = vpop.permute.xlu0 %1280
  %1282 = vrot.lane.b32.xlu0 %v1196, 113
  %v1283 = vpop.permute.xlu0 %1282
  %1284 = vrot.lane.b32.xlu0 %v1197, 113
  %v1285 = vpop.permute.xlu0 %1284
  %v1286 = vsel %vm176, %v1283, %v1285
  %v1287 = vsel %vm176, %v1281, %v1283
  %v1288 = vsel %vm176, %v1279, %v1281
  %v1289 = vsel %vm176, %v1285, %v1279
  %v1290 = vmul.f32 %v1288, %v53
  %v1291 = vmul.f32 %v1287, %v54
  %v1292 = vmul.f32 %v1286, %v55
  %v1293 = vmul.f32 %v1289, %v56
  %1294 = vrot.lane.b32.xlu0 %v1194, 112
  %v1295 = vpop.permute.xlu0 %1294
  %1296 = vrot.lane.b32.xlu0 %v1195, 112
  %v1297 = vpop.permute.xlu0 %1296
  %1298 = vrot.lane.b32.xlu0 %v1196, 112
  %v1299 = vpop.permute.xlu0 %1298
  %1300 = vrot.lane.b32.xlu0 %v1197, 112
  %v1301 = vpop.permute.xlu0 %1300
  %v1302 = vsel %vm193, %v1299, %v1301
  %v1303 = vsel %vm193, %v1297, %v1299
  %v1304 = vsel %vm193, %v1295, %v1297
  %v1305 = vsel %vm193, %v1301, %v1295
  %v1306 = vmul.f32 %v1304, %v58
  %v1307 = vmul.f32 %v1303, %v59
  %v1308 = vmul.f32 %v1302, %v60
  %v1309 = vmul.f32 %v1305, %v61
  %1310 = vrot.lane.b32.xlu0 %v1194, 111
  %v1311 = vpop.permute.xlu0 %1310
  %1312 = vrot.lane.b32.xlu0 %v1195, 111
  %v1313 = vpop.permute.xlu0 %1312
  %1314 = vrot.lane.b32.xlu0 %v1196, 111
  %v1315 = vpop.permute.xlu0 %1314
  %1316 = vrot.lane.b32.xlu0 %v1197, 111
  %v1317 = vpop.permute.xlu0 %1316
  %v1318 = vsel %vm210, %v1315, %v1317
  %v1319 = vsel %vm210, %v1313, %v1315
  %v1320 = vsel %vm210, %v1311, %v1313
  %v1321 = vsel %vm210, %v1317, %v1311
  %v1322 = vmul.f32 %v1320, %v63
  %v1323 = vmul.f32 %v1319, %v64
  %v1324 = vmul.f32 %v1318, %v65
  %v1325 = vmul.f32 %v1321, %v66
  %v1327 = vsel %vm219, %v826, 0
  %1329 = vmatprep.subr.mxu0 0.0
  %1330 = vmatpush1.msra.mxu0 0.0
  %1331 = vmatprep.subr.mxu0 0.0
  %1332 = vmatpush1.msra.mxu0 0.0
  %1333 = vmatprep.subr.mxu0 0.0
  %1334 = vmatpush1.msra.mxu0 0.0
  %1335 = vmatprep.subr.mxu0 0.0
  %1336 = vmatpush1.msra.mxu0 0.0
  %1337 = vmatprep.subr.mxu0 0.0
  %1338 = vmatpush1.msra.mxu0 0.0
  %1339 = vmatprep.subr.mxu0 0.0
  %1340 = vmatpush1.msra.mxu0 0.0
  %1341 = vmatprep.subr.mxu0 0.0
  %1342 = vmatpush1.msra.mxu0 0.0
  %1343 = vmatprep.subr.mxu0 %v1323
  %1344 = vmatpush1.msra.mxu0 %v1322
  %1345 = vmatprep.subr.mxu0 %v1307
  %1346 = vmatpush1.msra.mxu0 %v1306
  %1347 = vmatprep.subr.mxu0 %v1291
  %1348 = vmatpush1.msra.mxu0 %v1290
  %1349 = vmatprep.subr.mxu0 %v1275
  %1350 = vmatpush1.msra.mxu0 %v1274
  %1351 = vmatprep.subr.mxu0 %v1195
  %1352 = vmatpush1.msra.mxu0 %v1194
  %1353 = vmatprep.subr.mxu0 %v1259
  %1354 = vmatpush1.msra.mxu0 %v1258
  %1355 = vmatprep.subr.mxu0 %v1243
  %1356 = vmatpush1.msra.mxu0 %v1242
  %1357 = vmatprep.subr.mxu0 %v1227
  %1358 = vmatpush1.msra.mxu0 %v1226
  %1359 = vmatprep.subr.mxu0 %v1211
  %1360 = vmatpush1.msra.mxu0 %v1210
  %1361 = vmatprep.subr.mxu0 0.0
  %1362 = vmatpush2.msra.mxu0 0.0
  %1363 = vmatprep.subr.mxu0 0.0
  %1364 = vmatpush2.msra.mxu0 0.0
  %1365 = vmatprep.subr.mxu0 0.0
  %1366 = vmatpush2.msra.mxu0 0.0
  %1367 = vmatprep.subr.mxu0 0.0
  %1368 = vmatpush2.msra.mxu0 0.0
  %1369 = vmatprep.subr.mxu0 0.0
  %1370 = vmatpush2.msra.mxu0 0.0
  %1371 = vmatprep.subr.mxu0 0.0
  %1372 = vmatpush2.msra.mxu0 0.0
  %1373 = vmatprep.subr.mxu0 0.0
  %1374 = vmatpush2.msra.mxu0 0.0
  %1375 = vmatprep.subr.mxu0 0.0
  %1376 = vmatpush2.msra.mxu0 0.0
  %1377 = vmatprep.subr.mxu0 0.0
  %1378 = vmatpush2.msra.mxu0 0.0
  %1379 = vmatprep.subr.mxu0 0.0
  %1380 = vmatpush2.msra.mxu0 0.0
  %1381 = vmatprep.subr.mxu0 0.0
  %1382 = vmatpush2.msra.mxu0 0.0
  %1383 = vmatprep.subr.mxu0 0.0
  %1384 = vmatpush2.msra.mxu0 0.0
  %1385 = vmatprep.subr.mxu0 0.0
  %1386 = vmatpush2.msra.mxu0 0.0
  %1387 = vmatprep.subr.mxu0 0.0
  %1388 = vmatpush2.msra.mxu0 0.0
  %1389 = vmatprep.subr.mxu0 0.0
  %1390 = vmatpush2.msra.mxu0 0.0
  %1391 = vmatprep.subr.mxu0 0.0
  %1392 = vmatpush2.msra.mxu0 0.0
  %1393 = vmatprep.mubr.f32.mxu0 0.0
  %1394 = vmatmul.mubr.f32.gmra.mxu0 %v1327
  %v1395 = vpop.f32.mrf.mxu0
  %v1396 = vadd.f32 0.0, %v1395
  %v1397 = vpop.f32.mrf.mxu0
  %v1398 = vadd.f32 0.0, %v1397
  %1399 = vdwg.mxu0
  %1400 = vmatprep.subr.mxu0 0.0
  %1401 = vmatpush1.msra.mxu0 0.0
  %1402 = vmatprep.subr.mxu0 0.0
  %1403 = vmatpush1.msra.mxu0 0.0
  %1404 = vmatprep.subr.mxu0 0.0
  %1405 = vmatpush1.msra.mxu0 0.0
  %1406 = vmatprep.subr.mxu0 0.0
  %1407 = vmatpush1.msra.mxu0 0.0
  %1408 = vmatprep.subr.mxu0 0.0
  %1409 = vmatpush1.msra.mxu0 0.0
  %1410 = vmatprep.subr.mxu0 0.0
  %1411 = vmatpush1.msra.mxu0 0.0
  %1412 = vmatprep.subr.mxu0 0.0
  %1413 = vmatpush1.msra.mxu0 0.0
  %1414 = vmatprep.subr.mxu0 %v1325
  %1415 = vmatpush1.msra.mxu0 %v1324
  %1416 = vmatprep.subr.mxu0 %v1309
  %1417 = vmatpush1.msra.mxu0 %v1308
  %1418 = vmatprep.subr.mxu0 %v1293
  %1419 = vmatpush1.msra.mxu0 %v1292
  %1420 = vmatprep.subr.mxu0 %v1277
  %1421 = vmatpush1.msra.mxu0 %v1276
  %1422 = vmatprep.subr.mxu0 %v1197
  %1423 = vmatpush1.msra.mxu0 %v1196
  %1424 = vmatprep.subr.mxu0 %v1261
  %1425 = vmatpush1.msra.mxu0 %v1260
  %1426 = vmatprep.subr.mxu0 %v1245
  %1427 = vmatpush1.msra.mxu0 %v1244
  %1428 = vmatprep.subr.mxu0 %v1229
  %1429 = vmatpush1.msra.mxu0 %v1228
  %1430 = vmatprep.subr.mxu0 %v1213
  %1431 = vmatpush1.msra.mxu0 %v1212
  %1432 = vmatprep.subr.mxu0 0.0
  %1433 = vmatpush2.msra.mxu0 0.0
  %1434 = vmatprep.subr.mxu0 0.0
  %1435 = vmatpush2.msra.mxu0 0.0
  %1436 = vmatprep.subr.mxu0 0.0
  %1437 = vmatpush2.msra.mxu0 0.0
  %1438 = vmatprep.subr.mxu0 0.0
  %1439 = vmatpush2.msra.mxu0 0.0
  %1440 = vmatprep.subr.mxu0 0.0
  %1441 = vmatpush2.msra.mxu0 0.0
  %1442 = vmatprep.subr.mxu0 0.0
  %1443 = vmatpush2.msra.mxu0 0.0
  %1444 = vmatprep.subr.mxu0 0.0
  %1445 = vmatpush2.msra.mxu0 0.0
  %1446 = vmatprep.subr.mxu0 0.0
  %1447 = vmatpush2.msra.mxu0 0.0
  %1448 = vmatprep.subr.mxu0 0.0
  %1449 = vmatpush2.msra.mxu0 0.0
  %1450 = vmatprep.subr.mxu0 0.0
  %1451 = vmatpush2.msra.mxu0 0.0
  %1452 = vmatprep.subr.mxu0 0.0
  %1453 = vmatpush2.msra.mxu0 0.0
  %1454 = vmatprep.subr.mxu0 0.0
  %1455 = vmatpush2.msra.mxu0 0.0
  %1456 = vmatprep.subr.mxu0 0.0
  %1457 = vmatpush2.msra.mxu0 0.0
  %1458 = vmatprep.subr.mxu0 0.0
  %1459 = vmatpush2.msra.mxu0 0.0
  %1460 = vmatprep.subr.mxu0 0.0
  %1461 = vmatpush2.msra.mxu0 0.0
  %1462 = vmatprep.subr.mxu0 0.0
  %1463 = vmatpush2.msra.mxu0 0.0
  %1464 = vmatprep.mubr.f32.mxu0 0.0
  %1465 = vmatmul.mubr.f32.gmra.mxu0 %v1327
  %v1466 = vpop.f32.mrf.mxu0
  %v1467 = vadd.f32 0.0, %v1466
  %v1468 = vpop.f32.mrf.mxu0
  %v1469 = vadd.f32 0.0, %v1468
  %1470 = vdwg.mxu0
  %v1471 = vadd.f32 %v1396, %v1398
  %1472 = vadd.xlane.f32.xlu0 %v1471
  %v1473 = vpop.xlane.xlu0 %1472
  %v1474 = vmul.f32 %v1396, %v1396
  %v1475 = vmul.f32 %v1398, %v1398
  %v1476 = vadd.f32 %v1474, %v1475
  %1477 = vadd.xlane.f32.xlu0 %v1476
  %v1478 = vpop.xlane.xlu0 %1477
  %v1479 = vmul.f32 %v1473, %v373
  %v1480 = vmul.f32 %v1478, %v373
  %v1481 = vmul.f32 %v1479, %v1479
  %v1482 = vsub.f32 %v1480, %v1481
  %v1483 = vadd.f32 %v1482, 1e-05
  %v1484 = vrsqrt.pop %v1483
  %v1485 = vmul.f32 %v1484, %v828
  %v1486 = vmul.f32 %v1479, %v1485
  %v1487 = vsub.f32 %v830, %v1486
  %1489 = vset.pattern.permute.xlu0 0
  %1490 = vperm.xlu0 %1489, %v1485
  %v1491 = vpop.permute.xlu0 %1490
  %v1493 = vmul.f32 %v1396, %v1491
  %v1494 = vmul.f32 %v1398, %v1491
  %1496 = vset.pattern.permute.xlu0 0
  %1497 = vperm.xlu0 %1496, %v1487
  %v1498 = vpop.permute.xlu0 %1497
  %v1500 = vadd.f32 %v1493, %v1498
  %v1501 = vadd.f32 %v1494, %v1498
  %v1502 = vadd.f32 %v1467, %v1469
  %1503 = vadd.xlane.f32.xlu0 %v1502
  %v1504 = vpop.xlane.xlu0 %1503
  %v1505 = vmul.f32 %v1467, %v1467
  %v1506 = vmul.f32 %v1469, %v1469
  %v1507 = vadd.f32 %v1505, %v1506
  %1508 = vadd.xlane.f32.xlu0 %v1507
  %v1509 = vpop.xlane.xlu0 %1508
  %v1510 = vmul.f32 %v1504, %v373
  %v1511 = vmul.f32 %v1509, %v373
  %v1512 = vmul.f32 %v1510, %v1510
  %v1513 = vsub.f32 %v1511, %v1512
  %v1514 = vadd.f32 %v1513, 1e-05
  %v1515 = vrsqrt.pop %v1514
  %v1516 = vmul.f32 %v1515, %v828
  %v1517 = vmul.f32 %v1510, %v1516
  %v1518 = vsub.f32 %v830, %v1517
  %1520 = vset.pattern.permute.xlu0 0
  %1521 = vperm.xlu0 %1520, %v1516
  %v1522 = vpop.permute.xlu0 %1521
  %v1524 = vmul.f32 %v1467, %v1522
  %v1525 = vmul.f32 %v1469, %v1522
  %1527 = vset.pattern.permute.xlu0 0
  %1528 = vperm.xlu0 %1527, %v1518
  %v1529 = vpop.permute.xlu0 %1528
  %v1531 = vadd.f32 %v1524, %v1529
  %v1532 = vadd.f32 %v1525, %v1529
  %v1533 = vxor.u32 %v1500, 2147483648
  %v1534 = vxor.u32 %v1501, 2147483648
  %v1535 = vxor.u32 %v1531, 2147483648
  %v1536 = vxor.u32 %v1532, 2147483648
  %v1537 = vmul.f32 %v1533, 1.442695
  %v1538 = vpow.pop %v1537
  %v1539 = vmul.f32 %v1534, 1.442695
  %v1540 = vpow.pop %v1539
  %v1541 = vmul.f32 %v1535, 1.442695
  %v1542 = vpow.pop %v1541
  %v1543 = vmul.f32 %v1536, 1.442695
  %v1544 = vpow.pop %v1543
  %v1545 = vadd.f32 %v1538, 1.0
  %v1546 = vadd.f32 %v1540, 1.0
  %v1547 = vadd.f32 %v1542, 1.0
  %v1548 = vadd.f32 %v1544, 1.0
  %v1549 = vrcp.pop %v1545
  %v1550 = vmul.f32 1.0, %v1549
  %v1551 = vrcp.pop %v1546
  %v1552 = vmul.f32 1.0, %v1551
  %v1553 = vrcp.pop %v1547
  %v1554 = vmul.f32 1.0, %v1553
  %v1555 = vrcp.pop %v1548
  %v1556 = vmul.f32 1.0, %v1555
  %v1557 = vmul.f32 %v1500, %v1550
  %v1558 = vmul.f32 %v1501, %v1552
  %v1559 = vmul.f32 %v1531, %v1554
  %v1560 = vmul.f32 %v1532, %v1556
  %v1561 = vadd.f32 %v819, %v1557
  %v1562 = vadd.f32 %v820, %v1558
  %v1563 = vadd.f32 %v821, %v1559
  %v1564 = vadd.f32 %v822, %v1560
  %1565 = vst [vmem:[%s8] sm:$0xff] %v1561
  %1566 = vst [vmem:[%s8 + $0x8] sm:$0xff] %v1562
  %1567 = vst [vmem:[%s8 + $0x10] sm:$0xff] %v1563
  %1568 = vst [vmem:[%s8 + $0x18] sm:$0xff] %v1564
  %v1569 = vld [vmem:[%s5] sm:$0xff]
  %v1570 = vld [vmem:[%s5 + $0x8] sm:$0xff]
  %v1571 = vld [vmem:[%s6] sm:$0xff]
  %v1572 = vld [vmem:[%s6 + $0x8] sm:$0xff]
  %1573 = vrot.lane.b32.xlu0 %v1561, 17
  %v1574 = vpop.permute.xlu0 %1573
  %1575 = vrot.lane.b32.xlu0 %v1562, 17
  %v1576 = vpop.permute.xlu0 %1575
  %1577 = vrot.lane.b32.xlu0 %v1563, 17
  %v1578 = vpop.permute.xlu0 %1577
  %1579 = vrot.lane.b32.xlu0 %v1564, 17
  %v1580 = vpop.permute.xlu0 %1579
  %v1581 = vsel %vm91, %v1578, %v1580
  %v1582 = vsel %vm91, %v1576, %v1578
  %v1583 = vsel %vm91, %v1574, %v1576
  %v1584 = vsel %vm91, %v1580, %v1574
  %v1585 = vmul.f32 %v1584, %v28
  %v1586 = vmul.f32 %v1583, %v29
  %v1587 = vmul.f32 %v1582, %v30
  %v1588 = vmul.f32 %v1581, %v31
  %1589 = vrot.lane.b32.xlu0 %v1561, 16
  %v1590 = vpop.permute.xlu0 %1589
  %1591 = vrot.lane.b32.xlu0 %v1562, 16
  %v1592 = vpop.permute.xlu0 %1591
  %1593 = vrot.lane.b32.xlu0 %v1563, 16
  %v1594 = vpop.permute.xlu0 %1593
  %1595 = vrot.lane.b32.xlu0 %v1564, 16
  %v1596 = vpop.permute.xlu0 %1595
  %v1597 = vsel %vm108, %v1594, %v1596
  %v1598 = vsel %vm108, %v1592, %v1594
  %v1599 = vsel %vm108, %v1590, %v1592
  %v1600 = vsel %vm108, %v1596, %v1590
  %v1601 = vmul.f32 %v1600, %v33
  %v1602 = vmul.f32 %v1599, %v34
  %v1603 = vmul.f32 %v1598, %v35
  %v1604 = vmul.f32 %v1597, %v36
  %1605 = vrot.lane.b32.xlu0 %v1561, 15
  %v1606 = vpop.permute.xlu0 %1605
  %1607 = vrot.lane.b32.xlu0 %v1562, 15
  %v1608 = vpop.permute.xlu0 %1607
  %1609 = vrot.lane.b32.xlu0 %v1563, 15
  %v1610 = vpop.permute.xlu0 %1609
  %1611 = vrot.lane.b32.xlu0 %v1564, 15
  %v1612 = vpop.permute.xlu0 %1611
  %v1613 = vsel %vm125, %v1610, %v1612
  %v1614 = vsel %vm125, %v1608, %v1610
  %v1615 = vsel %vm125, %v1606, %v1608
  %v1616 = vsel %vm125, %v1612, %v1606
  %v1617 = vmul.f32 %v1616, %v38
  %v1618 = vmul.f32 %v1615, %v39
  %v1619 = vmul.f32 %v1614, %v40
  %v1620 = vmul.f32 %v1613, %v41
  %1621 = vrot.lane.b32.xlu0 %v1561, 1
  %v1622 = vpop.permute.xlu0 %1621
  %1623 = vrot.lane.b32.xlu0 %v1562, 1
  %v1624 = vpop.permute.xlu0 %1623
  %1625 = vrot.lane.b32.xlu0 %v1563, 1
  %v1626 = vpop.permute.xlu0 %1625
  %1627 = vrot.lane.b32.xlu0 %v1564, 1
  %v1628 = vpop.permute.xlu0 %1627
  %v1629 = vsel %vm142, %v1626, %v1628
  %v1630 = vsel %vm142, %v1624, %v1626
  %v1631 = vsel %vm142, %v1622, %v1624
  %v1632 = vsel %vm142, %v1628, %v1622
  %v1633 = vmul.f32 %v1632, %v43
  %v1634 = vmul.f32 %v1631, %v44
  %v1635 = vmul.f32 %v1630, %v45
  %v1636 = vmul.f32 %v1629, %v46
  %1637 = vrot.lane.b32.xlu0 %v1561, 127
  %v1638 = vpop.permute.xlu0 %1637
  %1639 = vrot.lane.b32.xlu0 %v1562, 127
  %v1640 = vpop.permute.xlu0 %1639
  %1641 = vrot.lane.b32.xlu0 %v1563, 127
  %v1642 = vpop.permute.xlu0 %1641
  %1643 = vrot.lane.b32.xlu0 %v1564, 127
  %v1644 = vpop.permute.xlu0 %1643
  %v1645 = vsel %vm159, %v1642, %v1644
  %v1646 = vsel %vm159, %v1640, %v1642
  %v1647 = vsel %vm159, %v1638, %v1640
  %v1648 = vsel %vm159, %v1644, %v1638
  %v1649 = vmul.f32 %v1647, %v48
  %v1650 = vmul.f32 %v1646, %v49
  %v1651 = vmul.f32 %v1645, %v50
  %v1652 = vmul.f32 %v1648, %v51
  %1653 = vrot.lane.b32.xlu0 %v1561, 113
  %v1654 = vpop.permute.xlu0 %1653
  %1655 = vrot.lane.b32.xlu0 %v1562, 113
  %v1656 = vpop.permute.xlu0 %1655
  %1657 = vrot.lane.b32.xlu0 %v1563, 113
  %v1658 = vpop.permute.xlu0 %1657
  %1659 = vrot.lane.b32.xlu0 %v1564, 113
  %v1660 = vpop.permute.xlu0 %1659
  %v1661 = vsel %vm176, %v1658, %v1660
  %v1662 = vsel %vm176, %v1656, %v1658
  %v1663 = vsel %vm176, %v1654, %v1656
  %v1664 = vsel %vm176, %v1660, %v1654
  %v1665 = vmul.f32 %v1663, %v53
  %v1666 = vmul.f32 %v1662, %v54
  %v1667 = vmul.f32 %v1661, %v55
  %v1668 = vmul.f32 %v1664, %v56
  %1669 = vrot.lane.b32.xlu0 %v1561, 112
  %v1670 = vpop.permute.xlu0 %1669
  %1671 = vrot.lane.b32.xlu0 %v1562, 112
  %v1672 = vpop.permute.xlu0 %1671
  %1673 = vrot.lane.b32.xlu0 %v1563, 112
  %v1674 = vpop.permute.xlu0 %1673
  %1675 = vrot.lane.b32.xlu0 %v1564, 112
  %v1676 = vpop.permute.xlu0 %1675
  %v1677 = vsel %vm193, %v1674, %v1676
  %v1678 = vsel %vm193, %v1672, %v1674
  %v1679 = vsel %vm193, %v1670, %v1672
  %v1680 = vsel %vm193, %v1676, %v1670
  %v1681 = vmul.f32 %v1679, %v58
  %v1682 = vmul.f32 %v1678, %v59
  %v1683 = vmul.f32 %v1677, %v60
  %v1684 = vmul.f32 %v1680, %v61
  %1685 = vrot.lane.b32.xlu0 %v1561, 111
  %v1686 = vpop.permute.xlu0 %1685
  %1687 = vrot.lane.b32.xlu0 %v1562, 111
  %v1688 = vpop.permute.xlu0 %1687
  %1689 = vrot.lane.b32.xlu0 %v1563, 111
  %v1690 = vpop.permute.xlu0 %1689
  %1691 = vrot.lane.b32.xlu0 %v1564, 111
  %v1692 = vpop.permute.xlu0 %1691
  %v1693 = vsel %vm210, %v1690, %v1692
  %v1694 = vsel %vm210, %v1688, %v1690
  %v1695 = vsel %vm210, %v1686, %v1688
  %v1696 = vsel %vm210, %v1692, %v1686
  %v1697 = vmul.f32 %v1695, %v63
  %v1698 = vmul.f32 %v1694, %v64
  %v1699 = vmul.f32 %v1693, %v65
  %v1700 = vmul.f32 %v1696, %v66
  %1702 = vset.pattern.permute.xlu0 0
  %1703 = vperm.xlu0 %1702, %v1571
  %v1704 = vpop.permute.xlu0 %1703
  %1707 = vset.pattern.permute.xlu0 0
  %1708 = vperm.xlu0 %1707, %v1572
  %v1709 = vpop.permute.xlu0 %1708
  %v1712 = vsel %vm219, %v1569, 0
  %v1715 = vsel %vm219, %v1570, 0
  %1717 = vmatprep.subr.mxu0 0.0
  %1718 = vmatpush1.msra.mxu0 0.0
  %1719 = vmatprep.subr.mxu0 0.0
  %1720 = vmatpush1.msra.mxu0 0.0
  %1721 = vmatprep.subr.mxu0 0.0
  %1722 = vmatpush1.msra.mxu0 0.0
  %1723 = vmatprep.subr.mxu0 0.0
  %1724 = vmatpush1.msra.mxu0 0.0
  %1725 = vmatprep.subr.mxu0 0.0
  %1726 = vmatpush1.msra.mxu0 0.0
  %1727 = vmatprep.subr.mxu0 0.0
  %1728 = vmatpush1.msra.mxu0 0.0
  %1729 = vmatprep.subr.mxu0 0.0
  %1730 = vmatpush1.msra.mxu0 0.0
  %1731 = vmatprep.subr.mxu0 %v1698
  %1732 = vmatpush1.msra.mxu0 %v1697
  %1733 = vmatprep.subr.mxu0 %v1682
  %1734 = vmatpush1.msra.mxu0 %v1681
  %1735 = vmatprep.subr.mxu0 %v1666
  %1736 = vmatpush1.msra.mxu0 %v1665
  %1737 = vmatprep.subr.mxu0 %v1650
  %1738 = vmatpush1.msra.mxu0 %v1649
  %1739 = vmatprep.subr.mxu0 %v1562
  %1740 = vmatpush1.msra.mxu0 %v1561
  %1741 = vmatprep.subr.mxu0 %v1634
  %1742 = vmatpush1.msra.mxu0 %v1633
  %1743 = vmatprep.subr.mxu0 %v1618
  %1744 = vmatpush1.msra.mxu0 %v1617
  %1745 = vmatprep.subr.mxu0 %v1602
  %1746 = vmatpush1.msra.mxu0 %v1601
  %1747 = vmatprep.subr.mxu0 %v1586
  %1748 = vmatpush1.msra.mxu0 %v1585
  %1749 = vmatprep.subr.mxu0 0.0
  %1750 = vmatpush2.msra.mxu0 0.0
  %1751 = vmatprep.subr.mxu0 0.0
  %1752 = vmatpush2.msra.mxu0 0.0
  %1753 = vmatprep.subr.mxu0 0.0
  %1754 = vmatpush2.msra.mxu0 0.0
  %1755 = vmatprep.subr.mxu0 0.0
  %1756 = vmatpush2.msra.mxu0 0.0
  %1757 = vmatprep.subr.mxu0 0.0
  %1758 = vmatpush2.msra.mxu0 0.0
  %1759 = vmatprep.subr.mxu0 0.0
  %1760 = vmatpush2.msra.mxu0 0.0
  %1761 = vmatprep.subr.mxu0 0.0
  %1762 = vmatpush2.msra.mxu0 0.0
  %1763 = vmatprep.subr.mxu0 0.0
  %1764 = vmatpush2.msra.mxu0 0.0
  %1765 = vmatprep.subr.mxu0 0.0
  %1766 = vmatpush2.msra.mxu0 0.0
  %1767 = vmatprep.subr.mxu0 0.0
  %1768 = vmatpush2.msra.mxu0 0.0
  %1769 = vmatprep.subr.mxu0 0.0
  %1770 = vmatpush2.msra.mxu0 0.0
  %1771 = vmatprep.subr.mxu0 0.0
  %1772 = vmatpush2.msra.mxu0 0.0
  %1773 = vmatprep.subr.mxu0 0.0
  %1774 = vmatpush2.msra.mxu0 0.0
  %1775 = vmatprep.subr.mxu0 0.0
  %1776 = vmatpush2.msra.mxu0 0.0
  %1777 = vmatprep.subr.mxu0 0.0
  %1778 = vmatpush2.msra.mxu0 0.0
  %1779 = vmatprep.subr.mxu0 0.0
  %1780 = vmatpush2.msra.mxu0 0.0
  %1781 = vmatprep.mubr.f32.mxu0 0.0
  %1782 = vmatmul.mubr.f32.gmra.mxu0 %v1712
  %v1783 = vpop.f32.mrf.mxu0
  %v1784 = vadd.f32 %v1704, %v1783
  %v1785 = vpop.f32.mrf.mxu0
  %v1786 = vadd.f32 %v1704, %v1785
  %1787 = vmatprep.mubr.f32.mxu0 0.0
  %1788 = vmatmul.mubr.f32.gmra.mxu0 %v1715
  %v1789 = vpop.f32.mrf.mxu0
  %v1790 = vadd.f32 %v1709, %v1789
  %v1791 = vpop.f32.mrf.mxu0
  %v1792 = vadd.f32 %v1709, %v1791
  %1793 = vdwg.mxu0
  %1794 = vmatprep.subr.mxu0 0.0
  %1795 = vmatpush1.msra.mxu0 0.0
  %1796 = vmatprep.subr.mxu0 0.0
  %1797 = vmatpush1.msra.mxu0 0.0
  %1798 = vmatprep.subr.mxu0 0.0
  %1799 = vmatpush1.msra.mxu0 0.0
  %1800 = vmatprep.subr.mxu0 0.0
  %1801 = vmatpush1.msra.mxu0 0.0
  %1802 = vmatprep.subr.mxu0 0.0
  %1803 = vmatpush1.msra.mxu0 0.0
  %1804 = vmatprep.subr.mxu0 0.0
  %1805 = vmatpush1.msra.mxu0 0.0
  %1806 = vmatprep.subr.mxu0 0.0
  %1807 = vmatpush1.msra.mxu0 0.0
  %1808 = vmatprep.subr.mxu0 %v1700
  %1809 = vmatpush1.msra.mxu0 %v1699
  %1810 = vmatprep.subr.mxu0 %v1684
  %1811 = vmatpush1.msra.mxu0 %v1683
  %1812 = vmatprep.subr.mxu0 %v1668
  %1813 = vmatpush1.msra.mxu0 %v1667
  %1814 = vmatprep.subr.mxu0 %v1652
  %1815 = vmatpush1.msra.mxu0 %v1651
  %1816 = vmatprep.subr.mxu0 %v1564
  %1817 = vmatpush1.msra.mxu0 %v1563
  %1818 = vmatprep.subr.mxu0 %v1636
  %1819 = vmatpush1.msra.mxu0 %v1635
  %1820 = vmatprep.subr.mxu0 %v1620
  %1821 = vmatpush1.msra.mxu0 %v1619
  %1822 = vmatprep.subr.mxu0 %v1604
  %1823 = vmatpush1.msra.mxu0 %v1603
  %1824 = vmatprep.subr.mxu0 %v1588
  %1825 = vmatpush1.msra.mxu0 %v1587
  %1826 = vmatprep.subr.mxu0 0.0
  %1827 = vmatpush2.msra.mxu0 0.0
  %1828 = vmatprep.subr.mxu0 0.0
  %1829 = vmatpush2.msra.mxu0 0.0
  %1830 = vmatprep.subr.mxu0 0.0
  %1831 = vmatpush2.msra.mxu0 0.0
  %1832 = vmatprep.subr.mxu0 0.0
  %1833 = vmatpush2.msra.mxu0 0.0
  %1834 = vmatprep.subr.mxu0 0.0
  %1835 = vmatpush2.msra.mxu0 0.0
  %1836 = vmatprep.subr.mxu0 0.0
  %1837 = vmatpush2.msra.mxu0 0.0
  %1838 = vmatprep.subr.mxu0 0.0
  %1839 = vmatpush2.msra.mxu0 0.0
  %1840 = vmatprep.subr.mxu0 0.0
  %1841 = vmatpush2.msra.mxu0 0.0
  %1842 = vmatprep.subr.mxu0 0.0
  %1843 = vmatpush2.msra.mxu0 0.0
  %1844 = vmatprep.subr.mxu0 0.0
  %1845 = vmatpush2.msra.mxu0 0.0
  %1846 = vmatprep.subr.mxu0 0.0
  %1847 = vmatpush2.msra.mxu0 0.0
  %1848 = vmatprep.subr.mxu0 0.0
  %1849 = vmatpush2.msra.mxu0 0.0
  %1850 = vmatprep.subr.mxu0 0.0
  %1851 = vmatpush2.msra.mxu0 0.0
  %1852 = vmatprep.subr.mxu0 0.0
  %1853 = vmatpush2.msra.mxu0 0.0
  %1854 = vmatprep.subr.mxu0 0.0
  %1855 = vmatpush2.msra.mxu0 0.0
  %1856 = vmatprep.subr.mxu0 0.0
  %1857 = vmatpush2.msra.mxu0 0.0
  %1858 = vmatprep.mubr.f32.mxu0 0.0
  %1859 = vmatmul.mubr.f32.gmra.mxu0 %v1712
  %v1860 = vpop.f32.mrf.mxu0
  %v1861 = vadd.f32 %v1704, %v1860
  %v1862 = vpop.f32.mrf.mxu0
  %v1863 = vadd.f32 %v1704, %v1862
  %1864 = vmatprep.mubr.f32.mxu0 0.0
  %1865 = vmatmul.mubr.f32.gmra.mxu0 %v1715
  %v1866 = vpop.f32.mrf.mxu0
  %v1867 = vadd.f32 %v1709, %v1866
  %v1868 = vpop.f32.mrf.mxu0
  %v1869 = vadd.f32 %v1709, %v1868
  %1870 = vdwg.mxu0
  %1871 = vst [vmem:[%s7] sm:$0xff] %v1784
  %1872 = vst [vmem:[%s7 + $0x8] sm:$0xff] %v1786
  %1873 = vst [vmem:[%s7 + $0x10] sm:$0xff] %v1861
  %1874 = vst [vmem:[%s7 + $0x18] sm:$0xff] %v1863
  %1875 = vst [vmem:[%s7 + $0x20] sm:$0xff] %v1790
  %1876 = vst [vmem:[%s7 + $0x28] sm:$0xff] %v1792
  %1877 = vst [vmem:[%s7 + $0x30] sm:$0xff] %v1867
  %1878 = vst [vmem:[%s7 + $0x38] sm:$0xff] %v1869
  // Predicated region
  $region30: #{denoising_block.1} parent=0 // pred_check
    _
  $region31: #{denoising_block.1} parent=0 // pred_check_branch
    %1880 = sbr.rel (0) target = $region33
  $region32: #{denoising_block.1} parent=0 // pred_region
    _
  $region33: #{denoising_block.1} parent=0 // pred_fallthru
    _
  // Predicated region
  $region34: #{denoising_block.1} parent=0 // pred_check
    _
  $region35: #{denoising_block.1} parent=0 // pred_check_branch
    %1882 = sbr.rel (0) target = $region37
  $region36: #{denoising_block.1} parent=0 // pred_region
    _
  $region37: #{denoising_block.1} parent=0 // pred_fallthru
    _
  // Predicated region
  $region38: #{denoising_block.1} parent=0 // pred_check
    _
  $region39: #{denoising_block.1} parent=0 // pred_check_branch
    %1884 = sbr.rel (0) target = $region41
  $region40: #{denoising_block.1} parent=0 // pred_region
    _
  $region41: #{denoising_block.1} parent=0 // pred_fallthru
    _
  // Predicated region
  $region42: #{denoising_block.1} parent=0 // pred_check
    _
  $region43: #{denoising_block.1} parent=0 // pred_check_branch
    %1886 = sbr.rel (0) target = $region45
  $region44: #{denoising_block.1} parent=0 // pred_region
    _
  $region45: #{denoising_block.1} parent=0 // pred_fallthru
    _

</llo_original>
